<compile_context>
chip_gen: v5e
topology: v5e:2x2
jax: 0.10.0
libtpu: 0.0.40
codegen_flags: <defaults>
</compile_context>

<pallas_src>
import jax
import jax.numpy as jnp
from jax import lax
from jax.experimental import pallas as pl
from jax.experimental.pallas import tpu as pltpu

LANE = 128      # last dims padded to multiples of this (lane axis)
SUBLANE = 8     # batch/row dims padded to multiples of this (sublane axis)


def _round_up(n, m):
    return ((n + m - 1) // m) * m


def _vmem():
    return pl.BlockSpec(memory_space=pltpu.MemorySpace.VMEM)


# ---------------- fused encoder RNN + latent head + latent->hidden -----------
def _encoder_latent_kernel(x_ref, lens_ref, wih_ref, whh_ref, b_ref,
                           wmulv_ref, bmulv_ref, eps_ref, l2h_w_ref, l2h_b_ref,
                           stats_ref, h0_ref, xproj_ref):
    TB = x_ref.shape[0]
    Bp = lens_ref.shape[0]
    H = whh_ref.shape[0]
    T = TB // Bp

    # Hoisted input projection (bias folded in): one big lane-dense matmul.
    xproj_ref[...] = (
        jnp.dot(x_ref[...], wih_ref[...], preferred_element_type=jnp.float32)
        + b_ref[...])

    whh = whh_ref[...]            # bf16, loaded once
    lens = lens_ref[...]          # (Bp, 1) int32

    def step(t, h):
        row = pl.multiple_of(t * Bp, Bp)
        xp = xproj_ref[pl.ds(row, Bp), :]                        # (Bp, H) f32
        h_new = jnp.tanh(
            xp + jnp.dot(h.astype(jnp.bfloat16), whh,
                         preferred_element_type=jnp.float32))
        return jnp.where(t < lens, h_new, h)                     # keep last valid h

    h_last = lax.fori_loop(0, T, step, jnp.zeros((Bp, H), jnp.float32),
                           unroll=True)

    # Latent head: mu|logvar fused into a single [Bp,H] x [H,2Lp] matmul.
    stats = (jnp.dot(h_last.astype(jnp.bfloat16), wmulv_ref[...],
                     preferred_element_type=jnp.float32) + bmulv_ref[...])
    stats_ref[...] = stats
    Lp = stats.shape[1] // 2
    mu = stats[:, :Lp]
    logvar = stats[:, Lp:]
    z = mu + jnp.exp(0.5 * logvar) * eps_ref[...]
    # latent -> decoder hidden bridge (single Linear), stays resident in VMEM.
    h0_ref[...] = (jnp.dot(z.astype(jnp.bfloat16), l2h_w_ref[...],
                           preferred_element_type=jnp.float32) + l2h_b_ref[...])


def encode_and_latent(x_flat, lens, wih, whh, b, wmulv, bmulv, eps, l2h_w, l2h_b):
    TB = x_flat.shape[0]
    Bp = lens.shape[0]
    H = whh.shape[0]
    L2 = wmulv.shape[1]
    Hd = l2h_w.shape[1]
    return pl.pallas_call(
        _encoder_latent_kernel,
        out_shape=(jax.ShapeDtypeStruct((Bp, L2), jnp.float32),   # mu|logvar
                   jax.ShapeDtypeStruct((Bp, Hd), jnp.float32)),  # decoder h0
        in_specs=[_vmem()] * 10,
        out_specs=(_vmem(), _vmem()),
        scratch_shapes=[pltpu.VMEM((TB, H), jnp.float32)],        # xproj
    )(x_flat, lens, wih, whh, b, wmulv, bmulv, eps, l2h_w, l2h_b)


# ------------------- fused decoder RNN + Linear + LogSoftmax -----------------
def _decoder_finalizer_kernel(x_ref, lens_ref, h0_ref, wih_ref, whh_ref, b_ref,
                              fin_w_ref, fin_b_ref, logp_ref,
                              xproj_ref, rnn_out_ref):
    TB = x_ref.shape[0]
    Bp = lens_ref.shape[0]
    T = TB // Bp

    # Hoisted input projection (bias folded in).
    xproj_ref[...] = (
        jnp.dot(x_ref[...], wih_ref[...], preferred_element_type=jnp.float32)
        + b_ref[...])

    whh = whh_ref[...]
    lens = lens_ref[...]

    def step(t, h):
        row = pl.multiple_of(t * Bp, Bp)
        xp = xproj_ref[pl.ds(row, Bp), :]
        h_new = jnp.tanh(
            xp + jnp.dot(h.astype(jnp.bfloat16), whh,
                         preferred_element_type=jnp.float32))
        valid = t < lens
        # pad_packed_sequence semantics: padded steps emit zeros.
        # Write straight to the VMEM scratch (no [B,T,H] loop carry).
        rnn_out_ref[pl.ds(row, Bp), :] = jnp.where(valid, h_new, 0.0)
        return jnp.where(valid, h_new, h)

    lax.fori_loop(0, T, step, h0_ref[...], unroll=True)

    # Fused finalizer: one [T*Bp, H] x [H, Vp] matmul + log-softmax.
    # Padded vocab columns carry a -1e30 bias so they vanish under softmax.
    logits = (jnp.dot(rnn_out_ref[...].astype(jnp.bfloat16), fin_w_ref[...],
                      preferred_element_type=jnp.float32) + fin_b_ref[...])
    m = jnp.max(logits, axis=-1, keepdims=True)
    lse = m + jnp.log(jnp.sum(jnp.exp(logits - m), axis=-1, keepdims=True))
    logp_ref[...] = logits - lse


def decode_and_finalize(x_flat, lens, h0, wih, whh, b, fin_w, fin_b):
    TB = x_flat.shape[0]
    H = whh.shape[0]
    Vp = fin_w.shape[1]
    # TODO(synk): for production sizes (large vocab / long sequences) tile the
    # finalizer matmul over a ("parallel", "arbitrary") grid of (row, vocab)
    # blocks with an online logsumexp so the logits never exceed VMEM
    # (64 MiB on v7x) and both v7x TensorCores are used.
    return pl.pallas_call(
        _decoder_finalizer_kernel,
        out_shape=jax.ShapeDtypeStruct((TB, Vp), jnp.float32),
        in_specs=[_vmem()] * 8,
        out_specs=_vmem(),
        scratch_shapes=[pltpu.VMEM((TB, H), jnp.float32),   # xproj
                        pltpu.VMEM((TB, H), jnp.float32)],  # rnn_out
    )(x_flat, lens, h0, wih, whh, b, fin_w, fin_b)


# ------------------------------- parameters ----------------------------------
def init_params(key, vocab, emb_dim, h_enc, h_dec, latent):
    ks = jax.random.split(key, 16)
    s = 0.1
    p = {
        "emb": jax.random.normal(ks[0], (vocab, emb_dim)) * s,
        "enc_wih": jax.random.normal(ks[1], (emb_dim, h_enc)) * s,
        "enc_whh": jax.random.normal(ks[2], (h_enc, h_enc)) * s,
        "enc_b": jax.random.normal(ks[3], (1, h_enc)) * s,     # b_ih + b_hh combined
        "wmu": jax.random.normal(ks[4], (h_enc, latent)) * s,
        "bmu": jax.random.normal(ks[5], (1, latent)) * s,
        "wlv": jax.random.normal(ks[6], (h_enc, latent)) * s,
        "blv": jax.random.normal(ks[7], (1, latent)) * s,
        "l2h_w": jax.random.normal(ks[8], (latent, h_dec)) * s,
        "l2h_b": jax.random.normal(ks[9], (1, h_dec)) * s,
        "dec_wih": jax.random.normal(ks[10], (emb_dim, h_dec)) * s,
        "dec_whh": jax.random.normal(ks[11], (h_dec, h_dec)) * s,
        "dec_b": jax.random.normal(ks[12], (1, h_dec)) * s,
        "fin_w": jax.random.normal(ks[13], (h_dec, vocab)) * s,
        "fin_b": jax.random.normal(ks[14], (1, vocab)) * s,
    }
    return {k: v.astype(jnp.float32) for k, v in p.items()}


def prepare_params(params):
    """Pad feature dims to 128-lane multiples (zero padding is exact), cast
    matmul weights to bf16, fuse (wmu|wlv) into one [H, 2*Lp] projection, and
    give padded vocab columns a -1e30 bias so log-softmax ignores them."""
    E, He = params["enc_wih"].shape
    Hd = params["dec_whh"].shape[0]
    L = params["wmu"].shape[1]
    V = params["fin_w"].shape[1]
    Ep, Hep, Hdp, Lp, Vp = (_round_up(d, LANE) for d in (E, He, Hd, L, V))

    def pad2(w, r, c):
        return jnp.pad(w, ((0, r - w.shape[0]), (0, c - w.shape[1])))

    wmulv = jnp.concatenate(
        [pad2(params["wmu"], He, Lp), pad2(params["wlv"], He, Lp)], axis=1)
    wmulv = pad2(wmulv, Hep, 2 * Lp)
    bmulv = jnp.concatenate(
        [pad2(params["bmu"], 1, Lp), pad2(params["blv"], 1, Lp)], axis=1)

    fin_b = pad2(params["fin_b"], 1, Vp)
    if Vp > V:
        fin_b = fin_b.at[:, V:].set(-1e30)

    bf16 = jnp.bfloat16
    prepped = {
        "emb": pad2(params["emb"], params["emb"].shape[0], Ep),   # f32 gather table
        "enc_wih": pad2(params["enc_wih"], Ep, Hep).astype(bf16),
        "enc_whh": pad2(params["enc_whh"], Hep, Hep).astype(bf16),
        "enc_b": pad2(params["enc_b"], 1, Hep),
        "wmulv": wmulv.astype(bf16),
        "bmulv": bmulv,
        "l2h_w": pad2(params["l2h_w"], Lp, Hdp).astype(bf16),
        "l2h_b": pad2(params["l2h_b"], 1, Hdp),
        "dec_wih": pad2(params["dec_wih"], Ep, Hdp).astype(bf16),
        "dec_whh": pad2(params["dec_whh"], Hdp, Hdp).astype(bf16),
        "dec_b": pad2(params["dec_b"], 1, Hdp),
        "fin_w": pad2(params["fin_w"], Hdp, Vp).astype(bf16),
        "fin_b": fin_b,
    }
    dims = {"L": L, "Lp": Lp, "V": V, "Vp": Vp}
    return prepped, dims


# ------------------------------ VAE forward ----------------------------------
def build_forward(dims):
    L, Lp, V = dims["L"], dims["Lp"], dims["V"]

    def vae_forward(prepped, unmasked_indexes, masked_indexes, seq_lens, eps):
        B, T = unmasked_indexes.shape
        Bp = _round_up(B, SUBLANE)   # sublane-pad batch: per-step loads/stores
                                     # inside the kernels are 8-row aligned
        emb = prepped["emb"]

        # Embedding lookup = plain-JAX gather glue; eval-mode Dropout == identity.
        def embed(idx):
            x = emb[idx]                                       # (B, T, Ep) f32
            x = jnp.pad(x, ((0, Bp - B), (0, 0), (0, 0)))      # (Bp, T, Ep)
            # time-major flatten in the wrapper; bf16 operands for the MXU
            return jnp.transpose(x, (1, 0, 2)).reshape(T * Bp, -1).astype(jnp.bfloat16)

        xu_flat = embed(unmasked_indexes)
        xm_flat = embed(masked_indexes)

        lens = jnp.zeros((Bp, 1), jnp.int32).at[:B, 0].set(seq_lens.astype(jnp.int32))
        eps_p = jnp.zeros((Bp, Lp), jnp.float32).at[:B, :L].set(eps)

        stats, dec_h0 = encode_and_latent(
            xu_flat, lens, prepped["enc_wih"], prepped["enc_whh"], prepped["enc_b"],
            prepped["wmulv"], prepped["bmulv"], eps_p,
            prepped["l2h_w"], prepped["l2h_b"])
        mu = stats[:B, :L]
        logvar = stats[:B, Lp:Lp + L]

        logp = decode_and_finalize(
            xm_flat, lens, dec_h0, prepped["dec_wih"], prepped["dec_whh"],
            prepped["dec_b"], prepped["fin_w"], prepped["fin_b"])   # (T*Bp, Vp)
        logits = jnp.transpose(logp.reshape(T, Bp, -1), (1, 0, 2))[:B, :, :V]
        return logits, (mu, logvar)

    return vae_forward


if __name__ == "__main__":
    B, T, VOCAB, EMB, HENC, HDEC, LATENT = 2, 8, 16, 32, 32, 32, 16
    START_IDX, MASK_IDX = 0, 1   # kept for parity with module config (unused in fwd)

    key = jax.random.PRNGKey(0)
    kp, k1, k2, k3 = jax.random.split(key, 4)
    params = init_params(kp, VOCAB, EMB, HENC, HDEC, LATENT)
    prepped, dims = prepare_params(params)

    unmasked_indexes = jax.random.randint(k1, (B, T), 0, VOCAB, dtype=jnp.int32)
    masked_indexes = jnp.where(
        jax.random.bernoulli(k2, 0.3, (B, T)), MASK_IDX, unmasked_indexes
    ).astype(jnp.int32)
    seq_lens = jnp.array([T, T - 3], dtype=jnp.int32)
    eps = jax.random.normal(k3, (B, LATENT), dtype=jnp.float32)

    forward = jax.jit(build_forward(dims))
    logits, (mu, logvar) = forward(prepped, unmasked_indexes, masked_indexes,
                                   seq_lens, eps)
    jax.block_until_ready((logits, mu, logvar))

    assert logits.shape == (B, T, VOCAB)
    assert mu.shape == (B, LATENT) and logvar.shape == (B, LATENT)
    # log-softmax rows sum to 1 in prob space
    assert jnp.allclose(jnp.exp(logits).sum(-1), 1.0, atol=1e-3)
    print("KERNEL_OK")
</pallas_src>

<mosaic_0001>
module attributes {stable_mosaic.version = 11 : i64} {
  func.func @_decoder_finalizer_kernel(%arg0: memref<64x128xbf16, #tpu.memory_space<vmem>>, %arg1: memref<8x1xi32, #tpu.memory_space<vmem>>, %arg2: memref<8x128xf32, #tpu.memory_space<vmem>>, %arg3: memref<128x128xbf16, #tpu.memory_space<vmem>>, %arg4: memref<128x128xbf16, #tpu.memory_space<vmem>>, %arg5: memref<1x128xf32, #tpu.memory_space<vmem>>, %arg6: memref<128x128xbf16, #tpu.memory_space<vmem>>, %arg7: memref<1x128xf32, #tpu.memory_space<vmem>>, %arg8: memref<64x128xf32, #tpu.memory_space<vmem>>, %arg9: memref<64x128xf32, #tpu.memory_space<vmem>>, %arg10: memref<64x128xf32, #tpu.memory_space<vmem>>) attributes {dimension_semantics = [], scalar_prefetch = 0 : i64, scratch_operands = 2 : i64, tpu.core_type = #tpu.core_type<tc>} {
    %c0 = arith.constant 0 : index
    %c0_0 = arith.constant 0 : index
    %0 = vector.load %arg0[%c0, %c0_0] : memref<64x128xbf16, #tpu.memory_space<vmem>>, vector<64x128xbf16>
    %c0_1 = arith.constant 0 : index
    %c0_2 = arith.constant 0 : index
    %1 = vector.load %arg3[%c0_1, %c0_2] : memref<128x128xbf16, #tpu.memory_space<vmem>>, vector<128x128xbf16>
    %cst = arith.constant dense<0.000000e+00> : vector<64x128xf32>
    %2 = tpu.matmul %0, %1, %cst {dimension_numbers = #tpu.dot_dimension_numbers<[1], [0], [0], [1], [0, 0, 1, 1], [], []>} : vector<64x128xbf16>, vector<128x128xbf16>, vector<64x128xf32> -> vector<64x128xf32>
    %c0_3 = arith.constant 0 : index
    %c0_4 = arith.constant 0 : index
    %3 = vector.load %arg5[%c0_3, %c0_4] : memref<1x128xf32, #tpu.memory_space<vmem>>, vector<1x128xf32>
    %4 = vector.broadcast %3 : vector<1x128xf32> to vector<64x128xf32>
    %5 = arith.addf %2, %4 : vector<64x128xf32>
    %c0_5 = arith.constant 0 : index
    %c0_6 = arith.constant 0 : index
    %6 = vector.load %arg9[%c0_5, %c0_6] : memref<64x128xf32, #tpu.memory_space<vmem>>, vector<64x128xf32>
    tpu.vector_store %arg9[%c0_5, %c0_6], %5 {strides = array<i32>} : memref<64x128xf32, #tpu.memory_space<vmem>>, vector<64x128xf32>,
    %c0_7 = arith.constant 0 : index
    %c0_8 = arith.constant 0 : index
    %7 = vector.load %arg4[%c0_7, %c0_8] : memref<128x128xbf16, #tpu.memory_space<vmem>>, vector<128x128xbf16>
    %c0_9 = arith.constant 0 : index
    %c0_10 = arith.constant 0 : index
    %8 = vector.load %arg1[%c0_9, %c0_10] : memref<8x1xi32, #tpu.memory_space<vmem>>, vector<8x1xi32>
    %c0_11 = arith.constant 0 : index
    %c0_12 = arith.constant 0 : index
    %9 = vector.load %arg2[%c0_11, %c0_12] : memref<8x128xf32, #tpu.memory_space<vmem>>, vector<8x128xf32>
    %c0_i32 = arith.constant 0 : i32
    %c8_i32 = arith.constant 8 : i32
    %10 = arith.muli %c0_i32, %c8_i32 : i32
    %11 = tpu.assume_multiple %10, 8 : i32
    %12 = arith.index_cast %11 : i32 to index
    %c0_13 = arith.constant 0 : index
    %13 = vector.load %arg9[%12, %c0_13] : memref<64x128xf32, #tpu.memory_space<vmem>>, vector<8x128xf32>
    %14 = arith.truncf %9 : vector<8x128xf32> to vector<8x128xbf16>
    %cst_14 = arith.constant dense<0.000000e+00> : vector<8x128xf32>
    %15 = tpu.matmul %14, %7, %cst_14 {dimension_numbers = #tpu.dot_dimension_numbers<[1], [0], [0], [1], [0, 0, 1, 1], [], []>} : vector<8x128xbf16>, vector<128x128xbf16>, vector<8x128xf32> -> vector<8x128xf32>
    %16 = arith.addf %13, %15 : vector<8x128xf32>
    %17 = math.tanh %16 : vector<8x128xf32>
    %18 = vector.broadcast %c0_i32 : i32 to vector<8x1xi32>
    %19 = arith.cmpi slt, %18, %8 : vector<8x1xi32>
    %cst_15 = arith.constant 0.000000e+00 : f32
    %20 = vector.shape_cast %19 : vector<8x1xi1> to vector<8x1xi1>
    %21 = vector.broadcast %20 : vector<8x1xi1> to vector<8x128xi1>
    %22 = vector.broadcast %cst_15 : f32 to vector<8x128xf32>
    %23 = arith.select %21, %17, %22 : vector<8x128xi1>, vector<8x128xf32>
    %24 = arith.index_cast %11 : i32 to index
    %c0_16 = arith.constant 0 : index
    %25 = vector.load %arg10[%24, %c0_16] : memref<64x128xf32, #tpu.memory_space<vmem>>, vector<8x128xf32>
    tpu.vector_store %arg10[%24, %c0_16], %23 {strides = array<i32>} : memref<64x128xf32, #tpu.memory_space<vmem>>, vector<8x128xf32>,
    %26 = vector.shape_cast %19 : vector<8x1xi1> to vector<8x1xi1>
    %27 = vector.broadcast %26 : vector<8x1xi1> to vector<8x128xi1>
    %28 = arith.select %27, %17, %9 : vector<8x128xi1>, vector<8x128xf32>
    %c1_i32 = arith.constant 1 : i32
    %c8_i32_17 = arith.constant 8 : i32
    %29 = arith.muli %c1_i32, %c8_i32_17 : i32
    %30 = tpu.assume_multiple %29, 8 : i32
    %31 = arith.index_cast %30 : i32 to index
    %c0_18 = arith.constant 0 : index
    %32 = vector.load %arg9[%31, %c0_18] : memref<64x128xf32, #tpu.memory_space<vmem>>, vector<8x128xf32>
    %33 = arith.truncf %28 : vector<8x128xf32> to vector<8x128xbf16>
    %cst_19 = arith.constant dense<0.000000e+00> : vector<8x128xf32>
    %34 = tpu.matmul %33, %7, %cst_19 {dimension_numbers = #tpu.dot_dimension_numbers<[1], [0], [0], [1], [0, 0, 1, 1], [], []>} : vector<8x128xbf16>, vector<128x128xbf16>, vector<8x128xf32> -> vector<8x128xf32>
    %35 = arith.addf %32, %34 : vector<8x128xf32>
    %36 = math.tanh %35 : vector<8x128xf32>
    %37 = vector.broadcast %c1_i32 : i32 to vector<8x1xi32>
    %38 = arith.cmpi slt, %37, %8 : vector<8x1xi32>
    %cst_20 = arith.constant 0.000000e+00 : f32
    %39 = vector.shape_cast %38 : vector<8x1xi1> to vector<8x1xi1>
    %40 = vector.broadcast %39 : vector<8x1xi1> to vector<8x128xi1>
    %41 = vector.broadcast %cst_20 : f32 to vector<8x128xf32>
    %42 = arith.select %40, %36, %41 : vector<8x128xi1>, vector<8x128xf32>
    %43 = arith.index_cast %30 : i32 to index
    %c0_21 = arith.constant 0 : index
    %44 = vector.load %arg10[%43, %c0_21] : memref<64x128xf32, #tpu.memory_space<vmem>>, vector<8x128xf32>
    tpu.vector_store %arg10[%43, %c0_21], %42 {strides = array<i32>} : memref<64x128xf32, #tpu.memory_space<vmem>>, vector<8x128xf32>,
    %45 = vector.shape_cast %38 : vector<8x1xi1> to vector<8x1xi1>
    %46 = vector.broadcast %45 : vector<8x1xi1> to vector<8x128xi1>
    %47 = arith.select %46, %36, %28 : vector<8x128xi1>, vector<8x128xf32>
    %c2_i32 = arith.constant 2 : i32
    %c8_i32_22 = arith.constant 8 : i32
    %48 = arith.muli %c2_i32, %c8_i32_22 : i32
    %49 = tpu.assume_multiple %48, 8 : i32
    %50 = arith.index_cast %49 : i32 to index
    %c0_23 = arith.constant 0 : index
    %51 = vector.load %arg9[%50, %c0_23] : memref<64x128xf32, #tpu.memory_space<vmem>>, vector<8x128xf32>
    %52 = arith.truncf %47 : vector<8x128xf32> to vector<8x128xbf16>
    %cst_24 = arith.constant dense<0.000000e+00> : vector<8x128xf32>
    %53 = tpu.matmul %52, %7, %cst_24 {dimension_numbers = #tpu.dot_dimension_numbers<[1], [0], [0], [1], [0, 0, 1, 1], [], []>} : vector<8x128xbf16>, vector<128x128xbf16>, vector<8x128xf32> -> vector<8x128xf32>
    %54 = arith.addf %51, %53 : vector<8x128xf32>
    %55 = math.tanh %54 : vector<8x128xf32>
    %56 = vector.broadcast %c2_i32 : i32 to vector<8x1xi32>
    %57 = arith.cmpi slt, %56, %8 : vector<8x1xi32>
    %cst_25 = arith.constant 0.000000e+00 : f32
    %58 = vector.shape_cast %57 : vector<8x1xi1> to vector<8x1xi1>
    %59 = vector.broadcast %58 : vector<8x1xi1> to vector<8x128xi1>
    %60 = vector.broadcast %cst_25 : f32 to vector<8x128xf32>
    %61 = arith.select %59, %55, %60 : vector<8x128xi1>, vector<8x128xf32>
    %62 = arith.index_cast %49 : i32 to index
    %c0_26 = arith.constant 0 : index
    %63 = vector.load %arg10[%62, %c0_26] : memref<64x128xf32, #tpu.memory_space<vmem>>, vector<8x128xf32>
    tpu.vector_store %arg10[%62, %c0_26], %61 {strides = array<i32>} : memref<64x128xf32, #tpu.memory_space<vmem>>, vector<8x128xf32>,
    %64 = vector.shape_cast %57 : vector<8x1xi1> to vector<8x1xi1>
    %65 = vector.broadcast %64 : vector<8x1xi1> to vector<8x128xi1>
    %66 = arith.select %65, %55, %47 : vector<8x128xi1>, vector<8x128xf32>
    %c3_i32 = arith.constant 3 : i32
    %c8_i32_27 = arith.constant 8 : i32
    %67 = arith.muli %c3_i32, %c8_i32_27 : i32
    %68 = tpu.assume_multiple %67, 8 : i32
    %69 = arith.index_cast %68 : i32 to index
    %c0_28 = arith.constant 0 : index
    %70 = vector.load %arg9[%69, %c0_28] : memref<64x128xf32, #tpu.memory_space<vmem>>, vector<8x128xf32>
    %71 = arith.truncf %66 : vector<8x128xf32> to vector<8x128xbf16>
    %cst_29 = arith.constant dense<0.000000e+00> : vector<8x128xf32>
    %72 = tpu.matmul %71, %7, %cst_29 {dimension_numbers = #tpu.dot_dimension_numbers<[1], [0], [0], [1], [0, 0, 1, 1], [], []>} : vector<8x128xbf16>, vector<128x128xbf16>, vector<8x128xf32> -> vector<8x128xf32>
    %73 = arith.addf %70, %72 : vector<8x128xf32>
    %74 = math.tanh %73 : vector<8x128xf32>
    %75 = vector.broadcast %c3_i32 : i32 to vector<8x1xi32>
    %76 = arith.cmpi slt, %75, %8 : vector<8x1xi32>
    %cst_30 = arith.constant 0.000000e+00 : f32
    %77 = vector.shape_cast %76 : vector<8x1xi1> to vector<8x1xi1>
    %78 = vector.broadcast %77 : vector<8x1xi1> to vector<8x128xi1>
    %79 = vector.broadcast %cst_30 : f32 to vector<8x128xf32>
    %80 = arith.select %78, %74, %79 : vector<8x128xi1>, vector<8x128xf32>
    %81 = arith.index_cast %68 : i32 to index
    %c0_31 = arith.constant 0 : index
    %82 = vector.load %arg10[%81, %c0_31] : memref<64x128xf32, #tpu.memory_space<vmem>>, vector<8x128xf32>
    tpu.vector_store %arg10[%81, %c0_31], %80 {strides = array<i32>} : memref<64x128xf32, #tpu.memory_space<vmem>>, vector<8x128xf32>,
    %83 = vector.shape_cast %76 : vector<8x1xi1> to vector<8x1xi1>
    %84 = vector.broadcast %83 : vector<8x1xi1> to vector<8x128xi1>
    %85 = arith.select %84, %74, %66 : vector<8x128xi1>, vector<8x128xf32>
    %c4_i32 = arith.constant 4 : i32
    %c8_i32_32 = arith.constant 8 : i32
    %86 = arith.muli %c4_i32, %c8_i32_32 : i32
    %87 = tpu.assume_multiple %86, 8 : i32
    %88 = arith.index_cast %87 : i32 to index
    %c0_33 = arith.constant 0 : index
    %89 = vector.load %arg9[%88, %c0_33] : memref<64x128xf32, #tpu.memory_space<vmem>>, vector<8x128xf32>
    %90 = arith.truncf %85 : vector<8x128xf32> to vector<8x128xbf16>
    %cst_34 = arith.constant dense<0.000000e+00> : vector<8x128xf32>
    %91 = tpu.matmul %90, %7, %cst_34 {dimension_numbers = #tpu.dot_dimension_numbers<[1], [0], [0], [1], [0, 0, 1, 1], [], []>} : vector<8x128xbf16>, vector<128x128xbf16>, vector<8x128xf32> -> vector<8x128xf32>
    %92 = arith.addf %89, %91 : vector<8x128xf32>
    %93 = math.tanh %92 : vector<8x128xf32>
    %94 = vector.broadcast %c4_i32 : i32 to vector<8x1xi32>
    %95 = arith.cmpi slt, %94, %8 : vector<8x1xi32>
    %cst_35 = arith.constant 0.000000e+00 : f32
    %96 = vector.shape_cast %95 : vector<8x1xi1> to vector<8x1xi1>
    %97 = vector.broadcast %96 : vector<8x1xi1> to vector<8x128xi1>
    %98 = vector.broadcast %cst_35 : f32 to vector<8x128xf32>
    %99 = arith.select %97, %93, %98 : vector<8x128xi1>, vector<8x128xf32>
    %100 = arith.index_cast %87 : i32 to index
    %c0_36 = arith.constant 0 : index
    %101 = vector.load %arg10[%100, %c0_36] : memref<64x128xf32, #tpu.memory_space<vmem>>, vector<8x128xf32>
    tpu.vector_store %arg10[%100, %c0_36], %99 {strides = array<i32>} : memref<64x128xf32, #tpu.memory_space<vmem>>, vector<8x128xf32>,
    %102 = vector.shape_cast %95 : vector<8x1xi1> to vector<8x1xi1>
    %103 = vector.broadcast %102 : vector<8x1xi1> to vector<8x128xi1>
    %104 = arith.select %103, %93, %85 : vector<8x128xi1>, vector<8x128xf32>
    %c5_i32 = arith.constant 5 : i32
    %c8_i32_37 = arith.constant 8 : i32
    %105 = arith.muli %c5_i32, %c8_i32_37 : i32
    %106 = tpu.assume_multiple %105, 8 : i32
    %107 = arith.index_cast %106 : i32 to index
    %c0_38 = arith.constant 0 : index
    %108 = vector.load %arg9[%107, %c0_38] : memref<64x128xf32, #tpu.memory_space<vmem>>, vector<8x128xf32>
    %109 = arith.truncf %104 : vector<8x128xf32> to vector<8x128xbf16>
    %cst_39 = arith.constant dense<0.000000e+00> : vector<8x128xf32>
    %110 = tpu.matmul %109, %7, %cst_39 {dimension_numbers = #tpu.dot_dimension_numbers<[1], [0], [0], [1], [0, 0, 1, 1], [], []>} : vector<8x128xbf16>, vector<128x128xbf16>, vector<8x128xf32> -> vector<8x128xf32>
    %111 = arith.addf %108, %110 : vector<8x128xf32>
    %112 = math.tanh %111 : vector<8x128xf32>
    %113 = vector.broadcast %c5_i32 : i32 to vector<8x1xi32>
    %114 = arith.cmpi slt, %113, %8 : vector<8x1xi32>
    %cst_40 = arith.constant 0.000000e+00 : f32
    %115 = vector.shape_cast %114 : vector<8x1xi1> to vector<8x1xi1>
    %116 = vector.broadcast %115 : vector<8x1xi1> to vector<8x128xi1>
    %117 = vector.broadcast %cst_40 : f32 to vector<8x128xf32>
    %118 = arith.select %116, %112, %117 : vector<8x128xi1>, vector<8x128xf32>
    %119 = arith.index_cast %106 : i32 to index
    %c0_41 = arith.constant 0 : index
    %120 = vector.load %arg10[%119, %c0_41] : memref<64x128xf32, #tpu.memory_space<vmem>>, vector<8x128xf32>
    tpu.vector_store %arg10[%119, %c0_41], %118 {strides = array<i32>} : memref<64x128xf32, #tpu.memory_space<vmem>>, vector<8x128xf32>,
    %121 = vector.shape_cast %114 : vector<8x1xi1> to vector<8x1xi1>
    %122 = vector.broadcast %121 : vector<8x1xi1> to vector<8x128xi1>
    %123 = arith.select %122, %112, %104 : vector<8x128xi1>, vector<8x128xf32>
    %c6_i32 = arith.constant 6 : i32
    %c8_i32_42 = arith.constant 8 : i32
    %124 = arith.muli %c6_i32, %c8_i32_42 : i32
    %125 = tpu.assume_multiple %124, 8 : i32
    %126 = arith.index_cast %125 : i32 to index
    %c0_43 = arith.constant 0 : index
    %127 = vector.load %arg9[%126, %c0_43] : memref<64x128xf32, #tpu.memory_space<vmem>>, vector<8x128xf32>
    %128 = arith.truncf %123 : vector<8x128xf32> to vector<8x128xbf16>
    %cst_44 = arith.constant dense<0.000000e+00> : vector<8x128xf32>
    %129 = tpu.matmul %128, %7, %cst_44 {dimension_numbers = #tpu.dot_dimension_numbers<[1], [0], [0], [1], [0, 0, 1, 1], [], []>} : vector<8x128xbf16>, vector<128x128xbf16>, vector<8x128xf32> -> vector<8x128xf32>
    %130 = arith.addf %127, %129 : vector<8x128xf32>
    %131 = math.tanh %130 : vector<8x128xf32>
    %132 = vector.broadcast %c6_i32 : i32 to vector<8x1xi32>
    %133 = arith.cmpi slt, %132, %8 : vector<8x1xi32>
    %cst_45 = arith.constant 0.000000e+00 : f32
    %134 = vector.shape_cast %133 : vector<8x1xi1> to vector<8x1xi1>
    %135 = vector.broadcast %134 : vector<8x1xi1> to vector<8x128xi1>
    %136 = vector.broadcast %cst_45 : f32 to vector<8x128xf32>
    %137 = arith.select %135, %131, %136 : vector<8x128xi1>, vector<8x128xf32>
    %138 = arith.index_cast %125 : i32 to index
    %c0_46 = arith.constant 0 : index
    %139 = vector.load %arg10[%138, %c0_46] : memref<64x128xf32, #tpu.memory_space<vmem>>, vector<8x128xf32>
    tpu.vector_store %arg10[%138, %c0_46], %137 {strides = array<i32>} : memref<64x128xf32, #tpu.memory_space<vmem>>, vector<8x128xf32>,
    %140 = vector.shape_cast %133 : vector<8x1xi1> to vector<8x1xi1>
    %141 = vector.broadcast %140 : vector<8x1xi1> to vector<8x128xi1>
    %142 = arith.select %141, %131, %123 : vector<8x128xi1>, vector<8x128xf32>
    %c7_i32 = arith.constant 7 : i32
    %c8_i32_47 = arith.constant 8 : i32
    %143 = arith.muli %c7_i32, %c8_i32_47 : i32
    %144 = tpu.assume_multiple %143, 8 : i32
    %145 = arith.index_cast %144 : i32 to index
    %c0_48 = arith.constant 0 : index
    %146 = vector.load %arg9[%145, %c0_48] : memref<64x128xf32, #tpu.memory_space<vmem>>, vector<8x128xf32>
    %147 = arith.truncf %142 : vector<8x128xf32> to vector<8x128xbf16>
    %cst_49 = arith.constant dense<0.000000e+00> : vector<8x128xf32>
    %148 = tpu.matmul %147, %7, %cst_49 {dimension_numbers = #tpu.dot_dimension_numbers<[1], [0], [0], [1], [0, 0, 1, 1], [], []>} : vector<8x128xbf16>, vector<128x128xbf16>, vector<8x128xf32> -> vector<8x128xf32>
    %149 = arith.addf %146, %148 : vector<8x128xf32>
    %150 = math.tanh %149 : vector<8x128xf32>
    %151 = vector.broadcast %c7_i32 : i32 to vector<8x1xi32>
    %152 = arith.cmpi slt, %151, %8 : vector<8x1xi32>
    %cst_50 = arith.constant 0.000000e+00 : f32
    %153 = vector.shape_cast %152 : vector<8x1xi1> to vector<8x1xi1>
    %154 = vector.broadcast %153 : vector<8x1xi1> to vector<8x128xi1>
    %155 = vector.broadcast %cst_50 : f32 to vector<8x128xf32>
    %156 = arith.select %154, %150, %155 : vector<8x128xi1>, vector<8x128xf32>
    %157 = arith.index_cast %144 : i32 to index
    %c0_51 = arith.constant 0 : index
    %158 = vector.load %arg10[%157, %c0_51] : memref<64x128xf32, #tpu.memory_space<vmem>>, vector<8x128xf32>
    tpu.vector_store %arg10[%157, %c0_51], %156 {strides = array<i32>} : memref<64x128xf32, #tpu.memory_space<vmem>>, vector<8x128xf32>,
    %159 = vector.shape_cast %152 : vector<8x1xi1> to vector<8x1xi1>
    %160 = vector.broadcast %159 : vector<8x1xi1> to vector<8x128xi1>
    %161 = arith.select %160, %150, %142 : vector<8x128xi1>, vector<8x128xf32>
    %c8_i32_52 = arith.constant 8 : i32
    %c0_53 = arith.constant 0 : index
    %c0_54 = arith.constant 0 : index
    %162 = vector.load %arg10[%c0_53, %c0_54] : memref<64x128xf32, #tpu.memory_space<vmem>>, vector<64x128xf32>
    %163 = arith.truncf %162 : vector<64x128xf32> to vector<64x128xbf16>
    %c0_55 = arith.constant 0 : index
    %c0_56 = arith.constant 0 : index
    %164 = vector.load %arg6[%c0_55, %c0_56] : memref<128x128xbf16, #tpu.memory_space<vmem>>, vector<128x128xbf16>
    %cst_57 = arith.constant dense<0.000000e+00> : vector<64x128xf32>
    %165 = tpu.matmul %163, %164, %cst_57 {dimension_numbers = #tpu.dot_dimension_numbers<[1], [0], [0], [1], [0, 0, 1, 1], [], []>} : vector<64x128xbf16>, vector<128x128xbf16>, vector<64x128xf32> -> vector<64x128xf32>
    %c0_58 = arith.constant 0 : index
    %c0_59 = arith.constant 0 : index
    %166 = vector.load %arg7[%c0_58, %c0_59] : memref<1x128xf32, #tpu.memory_space<vmem>>, vector<1x128xf32>
    %167 = vector.broadcast %166 : vector<1x128xf32> to vector<64x128xf32>
    %168 = arith.addf %165, %167 : vector<64x128xf32>
    %cst_60 = arith.constant dense<0xFF800000> : vector<64xf32>
    %169 = vector.multi_reduction <maximumf>, %168, %cst_60 [1] : vector<64x128xf32> to vector<64xf32>
    %170 = vector.shape_cast %169 : vector<64xf32> to vector<64x1xf32>
    %171 = vector.broadcast %170 : vector<64x1xf32> to vector<64x128xf32>
    %172 = arith.subf %168, %171 : vector<64x128xf32>
    %173 = math.exp %172 : vector<64x128xf32>
    %cst_61 = arith.constant dense<0.000000e+00> : vector<64xf32>
    %174 = vector.multi_reduction <add>, %173, %cst_61 [1] : vector<64x128xf32> to vector<64xf32>
    %175 = vector.shape_cast %174 : vector<64xf32> to vector<64x1xf32>
    %176 = math.log %175 : vector<64x1xf32>
    %177 = arith.addf %170, %176 : vector<64x1xf32>
    %178 = vector.broadcast %177 : vector<64x1xf32> to vector<64x128xf32>
    %179 = arith.subf %168, %178 : vector<64x128xf32>
    %c0_62 = arith.constant 0 : index
    %c0_63 = arith.constant 0 : index
    %180 = vector.load %arg8[%c0_62, %c0_63] : memref<64x128xf32, #tpu.memory_space<vmem>>, vector<64x128xf32>
    tpu.vector_store %arg8[%c0_62, %c0_63], %179 {strides = array<i32>} : memref<64x128xf32, #tpu.memory_space<vmem>>, vector<64x128xf32>,
    return
  }
}

module attributes {stable_mosaic.version = 11 : i64} {
  func.func @_encoder_latent_kernel(%arg0: memref<64x128xbf16, #tpu.memory_space<vmem>>, %arg1: memref<8x1xi32, #tpu.memory_space<vmem>>, %arg2: memref<128x128xbf16, #tpu.memory_space<vmem>>, %arg3: memref<128x128xbf16, #tpu.memory_space<vmem>>, %arg4: memref<1x128xf32, #tpu.memory_space<vmem>>, %arg5: memref<128x256xbf16, #tpu.memory_space<vmem>>, %arg6: memref<1x256xf32, #tpu.memory_space<vmem>>, %arg7: memref<8x128xf32, #tpu.memory_space<vmem>>, %arg8: memref<128x128xbf16, #tpu.memory_space<vmem>>, %arg9: memref<1x128xf32, #tpu.memory_space<vmem>>, %arg10: memref<8x256xf32, #tpu.memory_space<vmem>>, %arg11: memref<8x128xf32, #tpu.memory_space<vmem>>, %arg12: memref<64x128xf32, #tpu.memory_space<vmem>>) attributes {dimension_semantics = [], scalar_prefetch = 0 : i64, scratch_operands = 1 : i64, tpu.core_type = #tpu.core_type<tc>} {
    %c0 = arith.constant 0 : index
    %c0_0 = arith.constant 0 : index
    %0 = vector.load %arg0[%c0, %c0_0] : memref<64x128xbf16, #tpu.memory_space<vmem>>, vector<64x128xbf16>
    %c0_1 = arith.constant 0 : index
    %c0_2 = arith.constant 0 : index
    %1 = vector.load %arg2[%c0_1, %c0_2] : memref<128x128xbf16, #tpu.memory_space<vmem>>, vector<128x128xbf16>
    %cst = arith.constant dense<0.000000e+00> : vector<64x128xf32>
    %2 = tpu.matmul %0, %1, %cst {dimension_numbers = #tpu.dot_dimension_numbers<[1], [0], [0], [1], [0, 0, 1, 1], [], []>} : vector<64x128xbf16>, vector<128x128xbf16>, vector<64x128xf32> -> vector<64x128xf32>
    %c0_3 = arith.constant 0 : index
    %c0_4 = arith.constant 0 : index
    %3 = vector.load %arg4[%c0_3, %c0_4] : memref<1x128xf32, #tpu.memory_space<vmem>>, vector<1x128xf32>
    %4 = vector.broadcast %3 : vector<1x128xf32> to vector<64x128xf32>
    %5 = arith.addf %2, %4 : vector<64x128xf32>
    %c0_5 = arith.constant 0 : index
    %c0_6 = arith.constant 0 : index
    %6 = vector.load %arg12[%c0_5, %c0_6] : memref<64x128xf32, #tpu.memory_space<vmem>>, vector<64x128xf32>
    tpu.vector_store %arg12[%c0_5, %c0_6], %5 {strides = array<i32>} : memref<64x128xf32, #tpu.memory_space<vmem>>, vector<64x128xf32>,
    %c0_7 = arith.constant 0 : index
    %c0_8 = arith.constant 0 : index
    %7 = vector.load %arg3[%c0_7, %c0_8] : memref<128x128xbf16, #tpu.memory_space<vmem>>, vector<128x128xbf16>
    %c0_9 = arith.constant 0 : index
    %c0_10 = arith.constant 0 : index
    %8 = vector.load %arg1[%c0_9, %c0_10] : memref<8x1xi32, #tpu.memory_space<vmem>>, vector<8x1xi32>
    %cst_11 = arith.constant 0.000000e+00 : f32
    %9 = vector.broadcast %cst_11 : f32 to vector<8x128xf32>
    %c0_i32 = arith.constant 0 : i32
    %c8_i32 = arith.constant 8 : i32
    %10 = arith.muli %c0_i32, %c8_i32 : i32
    %11 = tpu.assume_multiple %10, 8 : i32
    %12 = arith.index_cast %11 : i32 to index
    %c0_12 = arith.constant 0 : index
    %13 = vector.load %arg12[%12, %c0_12] : memref<64x128xf32, #tpu.memory_space<vmem>>, vector<8x128xf32>
    %14 = arith.truncf %9 : vector<8x128xf32> to vector<8x128xbf16>
    %cst_13 = arith.constant dense<0.000000e+00> : vector<8x128xf32>
    %15 = tpu.matmul %14, %7, %cst_13 {dimension_numbers = #tpu.dot_dimension_numbers<[1], [0], [0], [1], [0, 0, 1, 1], [], []>} : vector<8x128xbf16>, vector<128x128xbf16>, vector<8x128xf32> -> vector<8x128xf32>
    %16 = arith.addf %13, %15 : vector<8x128xf32>
    %17 = math.tanh %16 : vector<8x128xf32>
    %18 = vector.broadcast %c0_i32 : i32 to vector<8x1xi32>
    %19 = arith.cmpi slt, %18, %8 : vector<8x1xi32>
    %20 = vector.shape_cast %19 : vector<8x1xi1> to vector<8x1xi1>
    %21 = vector.broadcast %20 : vector<8x1xi1> to vector<8x128xi1>
    %22 = arith.select %21, %17, %9 : vector<8x128xi1>, vector<8x128xf32>
    %c1_i32 = arith.constant 1 : i32
    %c8_i32_14 = arith.constant 8 : i32
    %23 = arith.muli %c1_i32, %c8_i32_14 : i32
    %24 = tpu.assume_multiple %23, 8 : i32
    %25 = arith.index_cast %24 : i32 to index
    %c0_15 = arith.constant 0 : index
    %26 = vector.load %arg12[%25, %c0_15] : memref<64x128xf32, #tpu.memory_space<vmem>>, vector<8x128xf32>
    %27 = arith.truncf %22 : vector<8x128xf32> to vector<8x128xbf16>
    %cst_16 = arith.constant dense<0.000000e+00> : vector<8x128xf32>
    %28 = tpu.matmul %27, %7, %cst_16 {dimension_numbers = #tpu.dot_dimension_numbers<[1], [0], [0], [1], [0, 0, 1, 1], [], []>} : vector<8x128xbf16>, vector<128x128xbf16>, vector<8x128xf32> -> vector<8x128xf32>
    %29 = arith.addf %26, %28 : vector<8x128xf32>
    %30 = math.tanh %29 : vector<8x128xf32>
    %31 = vector.broadcast %c1_i32 : i32 to vector<8x1xi32>
    %32 = arith.cmpi slt, %31, %8 : vector<8x1xi32>
    %33 = vector.shape_cast %32 : vector<8x1xi1> to vector<8x1xi1>
    %34 = vector.broadcast %33 : vector<8x1xi1> to vector<8x128xi1>
    %35 = arith.select %34, %30, %22 : vector<8x128xi1>, vector<8x128xf32>
    %c2_i32 = arith.constant 2 : i32
    %c8_i32_17 = arith.constant 8 : i32
    %36 = arith.muli %c2_i32, %c8_i32_17 : i32
    %37 = tpu.assume_multiple %36, 8 : i32
    %38 = arith.index_cast %37 : i32 to index
    %c0_18 = arith.constant 0 : index
    %39 = vector.load %arg12[%38, %c0_18] : memref<64x128xf32, #tpu.memory_space<vmem>>, vector<8x128xf32>
    %40 = arith.truncf %35 : vector<8x128xf32> to vector<8x128xbf16>
    %cst_19 = arith.constant dense<0.000000e+00> : vector<8x128xf32>
    %41 = tpu.matmul %40, %7, %cst_19 {dimension_numbers = #tpu.dot_dimension_numbers<[1], [0], [0], [1], [0, 0, 1, 1], [], []>} : vector<8x128xbf16>, vector<128x128xbf16>, vector<8x128xf32> -> vector<8x128xf32>
    %42 = arith.addf %39, %41 : vector<8x128xf32>
    %43 = math.tanh %42 : vector<8x128xf32>
    %44 = vector.broadcast %c2_i32 : i32 to vector<8x1xi32>
    %45 = arith.cmpi slt, %44, %8 : vector<8x1xi32>
    %46 = vector.shape_cast %45 : vector<8x1xi1> to vector<8x1xi1>
    %47 = vector.broadcast %46 : vector<8x1xi1> to vector<8x128xi1>
    %48 = arith.select %47, %43, %35 : vector<8x128xi1>, vector<8x128xf32>
    %c3_i32 = arith.constant 3 : i32
    %c8_i32_20 = arith.constant 8 : i32
    %49 = arith.muli %c3_i32, %c8_i32_20 : i32
    %50 = tpu.assume_multiple %49, 8 : i32
    %51 = arith.index_cast %50 : i32 to index
    %c0_21 = arith.constant 0 : index
    %52 = vector.load %arg12[%51, %c0_21] : memref<64x128xf32, #tpu.memory_space<vmem>>, vector<8x128xf32>
    %53 = arith.truncf %48 : vector<8x128xf32> to vector<8x128xbf16>
    %cst_22 = arith.constant dense<0.000000e+00> : vector<8x128xf32>
    %54 = tpu.matmul %53, %7, %cst_22 {dimension_numbers = #tpu.dot_dimension_numbers<[1], [0], [0], [1], [0, 0, 1, 1], [], []>} : vector<8x128xbf16>, vector<128x128xbf16>, vector<8x128xf32> -> vector<8x128xf32>
    %55 = arith.addf %52, %54 : vector<8x128xf32>
    %56 = math.tanh %55 : vector<8x128xf32>
    %57 = vector.broadcast %c3_i32 : i32 to vector<8x1xi32>
    %58 = arith.cmpi slt, %57, %8 : vector<8x1xi32>
    %59 = vector.shape_cast %58 : vector<8x1xi1> to vector<8x1xi1>
    %60 = vector.broadcast %59 : vector<8x1xi1> to vector<8x128xi1>
    %61 = arith.select %60, %56, %48 : vector<8x128xi1>, vector<8x128xf32>
    %c4_i32 = arith.constant 4 : i32
    %c8_i32_23 = arith.constant 8 : i32
    %62 = arith.muli %c4_i32, %c8_i32_23 : i32
    %63 = tpu.assume_multiple %62, 8 : i32
    %64 = arith.index_cast %63 : i32 to index
    %c0_24 = arith.constant 0 : index
    %65 = vector.load %arg12[%64, %c0_24] : memref<64x128xf32, #tpu.memory_space<vmem>>, vector<8x128xf32>
    %66 = arith.truncf %61 : vector<8x128xf32> to vector<8x128xbf16>
    %cst_25 = arith.constant dense<0.000000e+00> : vector<8x128xf32>
    %67 = tpu.matmul %66, %7, %cst_25 {dimension_numbers = #tpu.dot_dimension_numbers<[1], [0], [0], [1], [0, 0, 1, 1], [], []>} : vector<8x128xbf16>, vector<128x128xbf16>, vector<8x128xf32> -> vector<8x128xf32>
    %68 = arith.addf %65, %67 : vector<8x128xf32>
    %69 = math.tanh %68 : vector<8x128xf32>
    %70 = vector.broadcast %c4_i32 : i32 to vector<8x1xi32>
    %71 = arith.cmpi slt, %70, %8 : vector<8x1xi32>
    %72 = vector.shape_cast %71 : vector<8x1xi1> to vector<8x1xi1>
    %73 = vector.broadcast %72 : vector<8x1xi1> to vector<8x128xi1>
    %74 = arith.select %73, %69, %61 : vector<8x128xi1>, vector<8x128xf32>
    %c5_i32 = arith.constant 5 : i32
    %c8_i32_26 = arith.constant 8 : i32
    %75 = arith.muli %c5_i32, %c8_i32_26 : i32
    %76 = tpu.assume_multiple %75, 8 : i32
    %77 = arith.index_cast %76 : i32 to index
    %c0_27 = arith.constant 0 : index
    %78 = vector.load %arg12[%77, %c0_27] : memref<64x128xf32, #tpu.memory_space<vmem>>, vector<8x128xf32>
    %79 = arith.truncf %74 : vector<8x128xf32> to vector<8x128xbf16>
    %cst_28 = arith.constant dense<0.000000e+00> : vector<8x128xf32>
    %80 = tpu.matmul %79, %7, %cst_28 {dimension_numbers = #tpu.dot_dimension_numbers<[1], [0], [0], [1], [0, 0, 1, 1], [], []>} : vector<8x128xbf16>, vector<128x128xbf16>, vector<8x128xf32> -> vector<8x128xf32>
    %81 = arith.addf %78, %80 : vector<8x128xf32>
    %82 = math.tanh %81 : vector<8x128xf32>
    %83 = vector.broadcast %c5_i32 : i32 to vector<8x1xi32>
    %84 = arith.cmpi slt, %83, %8 : vector<8x1xi32>
    %85 = vector.shape_cast %84 : vector<8x1xi1> to vector<8x1xi1>
    %86 = vector.broadcast %85 : vector<8x1xi1> to vector<8x128xi1>
    %87 = arith.select %86, %82, %74 : vector<8x128xi1>, vector<8x128xf32>
    %c6_i32 = arith.constant 6 : i32
    %c8_i32_29 = arith.constant 8 : i32
    %88 = arith.muli %c6_i32, %c8_i32_29 : i32
    %89 = tpu.assume_multiple %88, 8 : i32
    %90 = arith.index_cast %89 : i32 to index
    %c0_30 = arith.constant 0 : index
    %91 = vector.load %arg12[%90, %c0_30] : memref<64x128xf32, #tpu.memory_space<vmem>>, vector<8x128xf32>
    %92 = arith.truncf %87 : vector<8x128xf32> to vector<8x128xbf16>
    %cst_31 = arith.constant dense<0.000000e+00> : vector<8x128xf32>
    %93 = tpu.matmul %92, %7, %cst_31 {dimension_numbers = #tpu.dot_dimension_numbers<[1], [0], [0], [1], [0, 0, 1, 1], [], []>} : vector<8x128xbf16>, vector<128x128xbf16>, vector<8x128xf32> -> vector<8x128xf32>
    %94 = arith.addf %91, %93 : vector<8x128xf32>
    %95 = math.tanh %94 : vector<8x128xf32>
    %96 = vector.broadcast %c6_i32 : i32 to vector<8x1xi32>
    %97 = arith.cmpi slt, %96, %8 : vector<8x1xi32>
    %98 = vector.shape_cast %97 : vector<8x1xi1> to vector<8x1xi1>
    %99 = vector.broadcast %98 : vector<8x1xi1> to vector<8x128xi1>
    %100 = arith.select %99, %95, %87 : vector<8x128xi1>, vector<8x128xf32>
    %c7_i32 = arith.constant 7 : i32
    %c8_i32_32 = arith.constant 8 : i32
    %101 = arith.muli %c7_i32, %c8_i32_32 : i32
    %102 = tpu.assume_multiple %101, 8 : i32
    %103 = arith.index_cast %102 : i32 to index
    %c0_33 = arith.constant 0 : index
    %104 = vector.load %arg12[%103, %c0_33] : memref<64x128xf32, #tpu.memory_space<vmem>>, vector<8x128xf32>
    %105 = arith.truncf %100 : vector<8x128xf32> to vector<8x128xbf16>
    %cst_34 = arith.constant dense<0.000000e+00> : vector<8x128xf32>
    %106 = tpu.matmul %105, %7, %cst_34 {dimension_numbers = #tpu.dot_dimension_numbers<[1], [0], [0], [1], [0, 0, 1, 1], [], []>} : vector<8x128xbf16>, vector<128x128xbf16>, vector<8x128xf32> -> vector<8x128xf32>
    %107 = arith.addf %104, %106 : vector<8x128xf32>
    %108 = math.tanh %107 : vector<8x128xf32>
    %109 = vector.broadcast %c7_i32 : i32 to vector<8x1xi32>
    %110 = arith.cmpi slt, %109, %8 : vector<8x1xi32>
    %111 = vector.shape_cast %110 : vector<8x1xi1> to vector<8x1xi1>
    %112 = vector.broadcast %111 : vector<8x1xi1> to vector<8x128xi1>
    %113 = arith.select %112, %108, %100 : vector<8x128xi1>, vector<8x128xf32>
    %c8_i32_35 = arith.constant 8 : i32
    %114 = arith.truncf %113 : vector<8x128xf32> to vector<8x128xbf16>
    %c0_36 = arith.constant 0 : index
    %c0_37 = arith.constant 0 : index
    %115 = vector.load %arg5[%c0_36, %c0_37] : memref<128x256xbf16, #tpu.memory_space<vmem>>, vector<128x256xbf16>
    %cst_38 = arith.constant dense<0.000000e+00> : vector<8x256xf32>
    %116 = tpu.matmul %114, %115, %cst_38 {dimension_numbers = #tpu.dot_dimension_numbers<[1], [0], [0], [1], [0, 0, 1, 1], [], []>} : vector<8x128xbf16>, vector<128x256xbf16>, vector<8x256xf32> -> vector<8x256xf32>
    %c0_39 = arith.constant 0 : index
    %c0_40 = arith.constant 0 : index
    %117 = vector.load %arg6[%c0_39, %c0_40] : memref<1x256xf32, #tpu.memory_space<vmem>>, vector<1x256xf32>
    %118 = vector.broadcast %117 : vector<1x256xf32> to vector<8x256xf32>
    %119 = arith.addf %116, %118 : vector<8x256xf32>
    %c0_41 = arith.constant 0 : index
    %c0_42 = arith.constant 0 : index
    %120 = vector.load %arg10[%c0_41, %c0_42] : memref<8x256xf32, #tpu.memory_space<vmem>>, vector<8x256xf32>
    tpu.vector_store %arg10[%c0_41, %c0_42], %119 {strides = array<i32>} : memref<8x256xf32, #tpu.memory_space<vmem>>, vector<8x256xf32>,
    %121 = vector.extract_strided_slice %119 {offsets = [0, 0], sizes = [8, 128], strides = [1, 1]} : vector<8x256xf32> to vector<8x128xf32>
    %122 = vector.extract_strided_slice %119 {offsets = [0, 128], sizes = [8, 128], strides = [1, 1]} : vector<8x256xf32> to vector<8x128xf32>
    %cst_43 = arith.constant 5.000000e-01 : f32
    %123 = vector.broadcast %cst_43 : f32 to vector<8x128xf32>
    %124 = arith.mulf %123, %122 : vector<8x128xf32>
    %125 = math.exp %124 : vector<8x128xf32>
    %c0_44 = arith.constant 0 : index
    %c0_45 = arith.constant 0 : index
    %126 = vector.load %arg7[%c0_44, %c0_45] : memref<8x128xf32, #tpu.memory_space<vmem>>, vector<8x128xf32>
    %127 = arith.mulf %125, %126 : vector<8x128xf32>
    %128 = arith.addf %121, %127 : vector<8x128xf32>
    %129 = arith.truncf %128 : vector<8x128xf32> to vector<8x128xbf16>
    %c0_46 = arith.constant 0 : index
    %c0_47 = arith.constant 0 : index
    %130 = vector.load %arg8[%c0_46, %c0_47] : memref<128x128xbf16, #tpu.memory_space<vmem>>, vector<128x128xbf16>
    %cst_48 = arith.constant dense<0.000000e+00> : vector<8x128xf32>
    %131 = tpu.matmul %129, %130, %cst_48 {dimension_numbers = #tpu.dot_dimension_numbers<[1], [0], [0], [1], [0, 0, 1, 1], [], []>} : vector<8x128xbf16>, vector<128x128xbf16>, vector<8x128xf32> -> vector<8x128xf32>
    %c0_49 = arith.constant 0 : index
    %c0_50 = arith.constant 0 : index
    %132 = vector.load %arg9[%c0_49, %c0_50] : memref<1x128xf32, #tpu.memory_space<vmem>>, vector<1x128xf32>
    %133 = vector.broadcast %132 : vector<1x128xf32> to vector<8x128xf32>
    %134 = arith.addf %131, %133 : vector<8x128xf32>
    %c0_51 = arith.constant 0 : index
    %c0_52 = arith.constant 0 : index
    %135 = vector.load %arg11[%c0_51, %c0_52] : memref<8x128xf32, #tpu.memory_space<vmem>>, vector<8x128xf32>
    tpu.vector_store %arg11[%c0_51, %c0_52], %134 {strides = array<i32>} : memref<8x128xf32, #tpu.memory_space<vmem>>, vector<8x128xf32>,
    return
  }
}

</mosaic_0001>

<llo_original>
// kernel: vae_forward.3
$region0: #{vae_forward.3}
  #allocation0 [shape = 'u32[]', space=smem, size = 0x4, offset = 0x4, fixed_abs, tag = 'smem constant byte address 0x4 - core index']
  #allocation1 [shape = 'u32[72,128]{1,0:T(1,128)}', space=vmem, size = 0x9000, scoped, tag = 'internal scratch']
  #allocation2 [shape = 'f32[64,128]{1,0:T(8,128)}', space=vmem, size = 0x8000, scoped, tag = 'scratch operand']
  #allocation3 [shape = 'f32[64,128]{1,0:T(8,128)}', space=vmem, size = 0x8000, scoped, tag = 'scratch operand']
  %s0 = inlined_call_operand.vmem [shape: bf16[64,128], index: 0, kind: input, shape index: {}]
  %s1 = inlined_call_operand.vmem [shape: s32[8,1], index: 1, kind: input, shape index: {}]
  %s2 = inlined_call_operand.vmem [shape: f32[8,128], index: 2, kind: input, shape index: {}]
  %s3 = inlined_call_operand.vmem [shape: bf16[128,128], index: 3, kind: input, shape index: {}]
  %s4 = inlined_call_operand.hbm [shape: bf16[128,128], index: 4, kind: input, shape index: {}]
  %s5 = inlined_call_operand.vmem [shape: f32[1,128], index: 5, kind: input, shape index: {}]
  %s6 = inlined_call_operand.hbm [shape: bf16[128,128], index: 6, kind: input, shape index: {}]
  %s7 = inlined_call_operand.vmem [shape: f32[1,128], index: 7, kind: input, shape index: {}]
  %s8 = inlined_call_operand.vmem [shape: f32[64,128], index: 8, kind: output, shape index: {}]
  %s9 = sld [smem:[#allocation0]]
  $region50: #{vae_forward.3} parent=0
    _
  %s11 = ssub.s32 1, %s9
  %s12 = scalar_select 0, %s11, %s9
  $region1: #{vae_forward.3} parent=0
    #allocation4 [shape = 'u8[32768]{0}', space=vmem, size = 0x8000, scoped, tag = 'input window, operand 4, single buffered']
    #allocation5 [shape = 's32[1]{0}', space=sflag, size = 0x4, scoped, tag = 'scoped memory for vae_forward.3']
    #allocation6 [shape = 'u8[32768]{0}', space=vmem, size = 0x8000, scoped, tag = 'input window, operand 6, single buffered']
    #allocation7 [shape = 's32[1]{0}', space=sflag, size = 0x4, scoped, tag = 'scoped memory for vae_forward.3']
    %13 = vsyncpa [#allocation5], 0
    %14 = vsyncpa [#allocation7], 0
    // Predicated region
    $region2: #{vae_forward.3} parent=1 // pred_check
      _
    $region3: #{vae_forward.3} parent=1 // pred_check_branch
      %16 = sbr.rel (0) target = $region5
    $region4: #{vae_forward.3} parent=1 // pred_region
      _
    $region5: #{vae_forward.3} parent=1 // pred_fallthru
      _
    // Predicated region
    $region6: #{vae_forward.3} parent=1 // pred_check
      _
    $region7: #{vae_forward.3} parent=1 // pred_check_branch
      %18 = sbr.rel (0) target = $region9
    $region8: #{vae_forward.3} parent=1 // pred_region
      _
    $region9: #{vae_forward.3} parent=1 // pred_fallthru
      _
    // Predicated region
    $region10: #{vae_forward.3} parent=1 // pred_check
      _
    $region11: #{vae_forward.3} parent=1 // pred_check_branch
      %20 = sbr.rel (0) target = $region13
    $region12: #{vae_forward.3} parent=1 // pred_region
      _
    $region13: #{vae_forward.3} parent=1 // pred_fallthru
      _
    // Predicated region
    $region14: #{vae_forward.3} parent=1 // pred_check
      _
    $region15: #{vae_forward.3} parent=1 // pred_check_branch
      %22 = sbr.rel (0) target = $region17
    $region16: #{vae_forward.3} parent=1 // pred_region
      _
    $region17: #{vae_forward.3} parent=1 // pred_fallthru
      _
    // Predicated region
    $region18: #{vae_forward.3} parent=1 // pred_check
      _
    $region19: #{vae_forward.3} parent=1 // pred_check_branch
      %24 = sbr.rel (0) target = $region21
    $region20: #{vae_forward.3} parent=1 // pred_region
      %26 = vsyncadd [#allocation5], 0
      %s27 = sshll.u32 %s4, 4
      %s28 = int_to_ptr.hbm [resolvable:$true] %s27
      %s29 = sshll.u32 [#allocation4], 4
      %s30 = int_to_ptr.vmem [resolvable:$true] %s29
      %35 = dma.hbm_to_vmem [thread:$0]  %s28, 1024, %s30, [#allocation5], 64, 64, 4
    $region21: #{vae_forward.3} parent=1 // pred_fallthru
      _
    // Predicated region
    $region22: #{vae_forward.3} parent=1 // pred_check
      _
    $region23: #{vae_forward.3} parent=1 // pred_check_branch
      %37 = sbr.rel (0) target = $region25
    $region24: #{vae_forward.3} parent=1 // pred_region
      _
    $region25: #{vae_forward.3} parent=1 // pred_fallthru
      _
    // Predicated region
    $region26: #{vae_forward.3} parent=1 // pred_check
      _
    $region27: #{vae_forward.3} parent=1 // pred_check_branch
      %39 = sbr.rel (0) target = $region29
    $region28: #{vae_forward.3} parent=1 // pred_region
      %41 = vsyncadd [#allocation7], 0
      %s42 = sshll.u32 %s6, 4
      %s43 = int_to_ptr.hbm [resolvable:$true] %s42
      %s44 = sshll.u32 [#allocation6], 4
      %s45 = int_to_ptr.vmem [resolvable:$true] %s44
      %50 = dma.hbm_to_vmem [thread:$0]  %s43, 1024, %s45, [#allocation7], 64, 64, 4
    $region29: #{vae_forward.3} parent=1 // pred_fallthru
      _
    // Predicated region
    $region30: #{vae_forward.3} parent=1 // pred_check
      _
    $region31: #{vae_forward.3} parent=1 // pred_check_branch
      %52 = sbr.rel (0) target = $region33
    $region32: #{vae_forward.3} parent=1 // pred_region
      _
    $region33: #{vae_forward.3} parent=1 // pred_fallthru
      _
    // Predicated region
    $region34: #{vae_forward.3} parent=1 // pred_check
      _
    $region35: #{vae_forward.3} parent=1 // pred_check_branch
      %54 = sbr.rel (0) target = $region37
    $region36: #{vae_forward.3} parent=1 // pred_region
      %56 = dma.done [#allocation5], 1024
    $region37: #{vae_forward.3} parent=1 // pred_fallthru
      _
    // Predicated region
    $region38: #{vae_forward.3} parent=1 // pred_check
      _
    $region39: #{vae_forward.3} parent=1 // pred_check_branch
      %58 = sbr.rel (0) target = $region41
    $region40: #{vae_forward.3} parent=1 // pred_region
      %60 = dma.done [#allocation7], 1024
    $region41: #{vae_forward.3} parent=1 // pred_fallthru
      _
    %v61 = vld [vmem:[%s0] sm:$0xf]
    %v62 = vld [vmem:[%s0 + $0x4] sm:$0xf]
    %v63 = vld [vmem:[%s0 + $0x8] sm:$0xf]
    %v64 = vld [vmem:[%s0 + $0xc] sm:$0xf]
    %v65 = vld [vmem:[%s0 + $0x10] sm:$0xf]
    %v66 = vld [vmem:[%s0 + $0x14] sm:$0xf]
    %v67 = vld [vmem:[%s0 + $0x18] sm:$0xf]
    %v68 = vld [vmem:[%s0 + $0x1c] sm:$0xf]
    %v69 = vld [vmem:[%s3] sm:$0xf]
    %v70 = vld [vmem:[%s3 + $0x4] sm:$0xf]
    %v71 = vld [vmem:[%s3 + $0x8] sm:$0xf]
    %v72 = vld [vmem:[%s3 + $0xc] sm:$0xf]
    %v73 = vld [vmem:[%s3 + $0x10] sm:$0xf]
    %v74 = vld [vmem:[%s3 + $0x14] sm:$0xf]
    %v75 = vld [vmem:[%s3 + $0x18] sm:$0xf]
    %v76 = vld [vmem:[%s3 + $0x1c] sm:$0xf]
    %v77 = vld [vmem:[%s3 + $0x20] sm:$0xf]
    %v78 = vld [vmem:[%s3 + $0x24] sm:$0xf]
    %v79 = vld [vmem:[%s3 + $0x28] sm:$0xf]
    %v80 = vld [vmem:[%s3 + $0x2c] sm:$0xf]
    %v81 = vld [vmem:[%s3 + $0x30] sm:$0xf]
    %v82 = vld [vmem:[%s3 + $0x34] sm:$0xf]
    %v83 = vld [vmem:[%s3 + $0x38] sm:$0xf]
    %v84 = vld [vmem:[%s3 + $0x3c] sm:$0xf]
    %v85 = vld [vmem:[%s5] sm:$0x1]
    %v87 = vperm.slane %v85, 0
    %v97 = vunpack.c.l.b16 %v61
    %v98 = vunpack.c.l.b16 %v62
    %v99 = vunpack.c.l.b16 %v63
    %v100 = vunpack.c.l.b16 %v64
    %v101 = vunpack.c.l.b16 %v65
    %v102 = vunpack.c.l.b16 %v66
    %v103 = vunpack.c.l.b16 %v67
    %v104 = vunpack.c.l.b16 %v68
    %v105 = vpack.c.b16 %v98, %v97
    %v106 = vpack.c.b16 %v100, %v99
    %v107 = vpack.c.b16 %v102, %v101
    %v108 = vpack.c.b16 %v104, %v103
    %v129 = vunpack.c.l.b16 %v69
    %v130 = vunpack.c.l.b16 %v70
    %v131 = vunpack.c.l.b16 %v71
    %v132 = vunpack.c.l.b16 %v72
    %v133 = vunpack.c.l.b16 %v73
    %v134 = vunpack.c.l.b16 %v74
    %v135 = vunpack.c.l.b16 %v75
    %v136 = vunpack.c.l.b16 %v76
    %v137 = vunpack.c.l.b16 %v77
    %v138 = vunpack.c.l.b16 %v78
    %v139 = vunpack.c.l.b16 %v79
    %v140 = vunpack.c.l.b16 %v80
    %v141 = vunpack.c.l.b16 %v81
    %v142 = vunpack.c.l.b16 %v82
    %v143 = vunpack.c.l.b16 %v83
    %v144 = vunpack.c.l.b16 %v84
    %v145 = vpack.c.b16 %v130, %v129
    %v146 = vpack.c.b16 %v132, %v131
    %v147 = vpack.c.b16 %v134, %v133
    %v148 = vpack.c.b16 %v136, %v135
    %v149 = vpack.c.b16 %v138, %v137
    %v150 = vpack.c.b16 %v140, %v139
    %v151 = vpack.c.b16 %v142, %v141
    %v152 = vpack.c.b16 %v144, %v143
    %161 = vmatpush.bf16.msra.mxu0 %v152
    %162 = vmatpush.bf16.msra.mxu0 %v151
    %163 = vmatpush.bf16.msra.mxu0 %v150
    %164 = vmatpush.bf16.msra.mxu0 %v149
    %165 = vmatpush.bf16.msra.mxu0 %v148
    %166 = vmatpush.bf16.msra.mxu0 %v147
    %167 = vmatpush.bf16.msra.mxu0 %v146
    %168 = vmatpush.bf16.msra.mxu0 %v145
    %169 = vmatmul.bf16.gmra.mxu0 %v105
    %v170 = vpop.f32.mrf.mxu0
    %v171 = vadd.f32 %v87, %v170
    %v172 = vpop.f32.mrf.mxu0
    %v173 = vadd.f32 %v87, %v172
    %174 = vmatmul.bf16.gmra.mxu0 %v106
    %v175 = vpop.f32.mrf.mxu0
    %v176 = vadd.f32 %v87, %v175
    %v177 = vpop.f32.mrf.mxu0
    %v178 = vadd.f32 %v87, %v177
    %179 = vmatmul.bf16.gmra.mxu0 %v107
    %v180 = vpop.f32.mrf.mxu0
    %v181 = vadd.f32 %v87, %v180
    %v182 = vpop.f32.mrf.mxu0
    %v183 = vadd.f32 %v87, %v182
    %184 = vmatmul.bf16.gmra.mxu0 %v108
    %v185 = vpop.f32.mrf.mxu0
    %v186 = vadd.f32 %v87, %v185
    %v187 = vpop.f32.mrf.mxu0
    %v188 = vadd.f32 %v87, %v187
    %189 = vdwg.mxu0
    %190 = vst [vmem:[#allocation2] sm:$0xff] %v171
    %191 = vst [vmem:[#allocation2 + $0x8] sm:$0xff] %v173
    %192 = vst [vmem:[#allocation2 + $0x10] sm:$0xff] %v176
    %193 = vst [vmem:[#allocation2 + $0x18] sm:$0xff] %v178
    %194 = vst [vmem:[#allocation2 + $0x20] sm:$0xff] %v181
    %195 = vst [vmem:[#allocation2 + $0x28] sm:$0xff] %v183
    %196 = vst [vmem:[#allocation2 + $0x30] sm:$0xff] %v186
    %197 = vst [vmem:[#allocation2 + $0x38] sm:$0xff] %v188
    %v198 = vld [vmem:[#allocation4] sm:$0xf]
    %v199 = vld [vmem:[#allocation4 + $0x4] sm:$0xf]
    %v200 = vld [vmem:[#allocation4 + $0x8] sm:$0xf]
    %v201 = vld [vmem:[#allocation4 + $0xc] sm:$0xf]
    %v202 = vld [vmem:[#allocation4 + $0x10] sm:$0xf]
    %v203 = vld [vmem:[#allocation4 + $0x14] sm:$0xf]
    %v204 = vld [vmem:[#allocation4 + $0x18] sm:$0xf]
    %v205 = vld [vmem:[#allocation4 + $0x1c] sm:$0xf]
    %v206 = vld [vmem:[#allocation4 + $0x20] sm:$0xf]
    %v207 = vld [vmem:[#allocation4 + $0x24] sm:$0xf]
    %v208 = vld [vmem:[#allocation4 + $0x28] sm:$0xf]
    %v209 = vld [vmem:[#allocation4 + $0x2c] sm:$0xf]
    %v210 = vld [vmem:[#allocation4 + $0x30] sm:$0xf]
    %v211 = vld [vmem:[#allocation4 + $0x34] sm:$0xf]
    %v212 = vld [vmem:[#allocation4 + $0x38] sm:$0xf]
    %v213 = vld [vmem:[#allocation4 + $0x3c] sm:$0xf]
    %v214 = vld [vmem:[%s1] sm:$0xff]
    %v215 = vld [vmem:[%s2] sm:$0xff]
    %v216 = vld [vmem:[#allocation2] sm:$0xff]
    %v217 = vpack.c.bf16 %v215, %v215
    %v234 = vunpack.c.l.b16 %v198
    %v235 = vunpack.c.l.b16 %v199
    %v236 = vunpack.c.l.b16 %v200
    %v237 = vunpack.c.l.b16 %v201
    %v238 = vunpack.c.l.b16 %v202
    %v239 = vunpack.c.l.b16 %v203
    %v240 = vunpack.c.l.b16 %v204
    %v241 = vunpack.c.l.b16 %v205
    %v242 = vunpack.c.l.b16 %v206
    %v243 = vunpack.c.l.b16 %v207
    %v244 = vunpack.c.l.b16 %v208
    %v245 = vunpack.c.l.b16 %v209
    %v246 = vunpack.c.l.b16 %v210
    %v247 = vunpack.c.l.b16 %v211
    %v248 = vunpack.c.l.b16 %v212
    %v249 = vunpack.c.l.b16 %v213
    %v250 = vpack.c.b16 %v235, %v234
    %v251 = vpack.c.b16 %v237, %v236
    %v252 = vpack.c.b16 %v239, %v238
    %v253 = vpack.c.b16 %v241, %v240
    %v254 = vpack.c.b16 %v243, %v242
    %v255 = vpack.c.b16 %v245, %v244
    %v256 = vpack.c.b16 %v247, %v246
    %v257 = vpack.c.b16 %v249, %v248
    %266 = vmatpush.bf16.msra.mxu0 %v257
    %267 = vmatpush.bf16.msra.mxu0 %v256
    %268 = vmatpush.bf16.msra.mxu0 %v255
    %269 = vmatpush.bf16.msra.mxu0 %v254
    %270 = vmatpush.bf16.msra.mxu0 %v253
    %271 = vmatpush.bf16.msra.mxu0 %v252
    %272 = vmatpush.bf16.msra.mxu0 %v251
    %273 = vmatpush.bf16.msra.mxu0 %v250
    %274 = vmatmul.bf16.gmra.mxu0 %v217
    %v275 = vpop.f32.mrf.mxu0
    %v276 = vadd.f32 0.0, %v275
    %v277 = vpop.f32.mrf.mxu0
    %278 = vdwg.mxu0
    %v279 = vadd.f32 %v216, %v276
    %v280 = vtanh.pop %v279
    %vm281 = vcmp.gt.s32.totalorder %v214, 0
    %v282 = vsel %vm281, 1, 0
    %283 = vset.pattern.permute.xlu0 0
    %284 = vperm.xlu0 %283, %v282
    %v285 = vpop.permute.xlu0 %284
    %vm286 = vcmp.eq.s32.totalorder %v285, 1
    %v287 = vsel %vm286, %v280, 0.0
    %288 = vst [vmem:[#allocation3] sm:$0xff] %v287
    %v289 = vsel %vm286, %v280, %v215
    %s290 = scalar_lea.vmem [#allocation2], 8
    %v291 = vld [vmem:[%s290] sm:$0xff]
    %v292 = vpack.c.bf16 %v289, %v289
    %293 = vmatpush.bf16.msra.mxu0 %v257
    %294 = vmatpush.bf16.msra.mxu0 %v256
    %295 = vmatpush.bf16.msra.mxu0 %v255
    %296 = vmatpush.bf16.msra.mxu0 %v254
    %297 = vmatpush.bf16.msra.mxu0 %v253
    %298 = vmatpush.bf16.msra.mxu0 %v252
    %299 = vmatpush.bf16.msra.mxu0 %v251
    %300 = vmatpush.bf16.msra.mxu0 %v250
    %301 = vmatmul.bf16.gmra.mxu0 %v292
    %v302 = vpop.f32.mrf.mxu0
    %v303 = vadd.f32 0.0, %v302
    %v304 = vpop.f32.mrf.mxu0
    %305 = vdwg.mxu0
    %v306 = vadd.f32 %v291, %v303
    %v307 = vtanh.pop %v306
    %vm308 = vcmp.gt.s32.totalorder %v214, 1
    %v309 = vsel %vm308, 1, 0
    %310 = vset.pattern.permute.xlu0 0
    %311 = vperm.xlu0 %310, %v309
    %v312 = vpop.permute.xlu0 %311
    %vm313 = vcmp.eq.s32.totalorder %v312, 1
    %v314 = vsel %vm313, %v307, 0.0
    %s315 = scalar_lea.vmem [#allocation3], 8
    %316 = vst [vmem:[%s315] sm:$0xff] %v314
    %v317 = vsel %vm313, %v307, %v289
    %s318 = scalar_lea.vmem [#allocation2], 16
    %v319 = vld [vmem:[%s318] sm:$0xff]
    %v320 = vpack.c.bf16 %v317, %v317
    %321 = vmatpush.bf16.msra.mxu0 %v257
    %322 = vmatpush.bf16.msra.mxu0 %v256
    %323 = vmatpush.bf16.msra.mxu0 %v255
    %324 = vmatpush.bf16.msra.mxu0 %v254
    %325 = vmatpush.bf16.msra.mxu0 %v253
    %326 = vmatpush.bf16.msra.mxu0 %v252
    %327 = vmatpush.bf16.msra.mxu0 %v251
    %328 = vmatpush.bf16.msra.mxu0 %v250
    %329 = vmatmul.bf16.gmra.mxu0 %v320
    %v330 = vpop.f32.mrf.mxu0
    %v331 = vadd.f32 0.0, %v330
    %v332 = vpop.f32.mrf.mxu0
    %333 = vdwg.mxu0
    %v334 = vadd.f32 %v319, %v331
    %v335 = vtanh.pop %v334
    %vm336 = vcmp.gt.s32.totalorder %v214, 2
    %v337 = vsel %vm336, 1, 0
    %338 = vset.pattern.permute.xlu0 0
    %339 = vperm.xlu0 %338, %v337
    %v340 = vpop.permute.xlu0 %339
    %vm341 = vcmp.eq.s32.totalorder %v340, 1
    %v342 = vsel %vm341, %v335, 0.0
    %s343 = scalar_lea.vmem [#allocation3], 16
    %344 = vst [vmem:[%s343] sm:$0xff] %v342
    %v345 = vsel %vm341, %v335, %v317
    %s346 = scalar_lea.vmem [#allocation2], 24
    %v347 = vld [vmem:[%s346] sm:$0xff]
    %v348 = vpack.c.bf16 %v345, %v345
    %349 = vmatpush.bf16.msra.mxu0 %v257
    %350 = vmatpush.bf16.msra.mxu0 %v256
    %351 = vmatpush.bf16.msra.mxu0 %v255
    %352 = vmatpush.bf16.msra.mxu0 %v254
    %353 = vmatpush.bf16.msra.mxu0 %v253
    %354 = vmatpush.bf16.msra.mxu0 %v252
    %355 = vmatpush.bf16.msra.mxu0 %v251
    %356 = vmatpush.bf16.msra.mxu0 %v250
    %357 = vmatmul.bf16.gmra.mxu0 %v348
    %v358 = vpop.f32.mrf.mxu0
    %v359 = vadd.f32 0.0, %v358
    %v360 = vpop.f32.mrf.mxu0
    %361 = vdwg.mxu0
    %v362 = vadd.f32 %v347, %v359
    %v363 = vtanh.pop %v362
    %vm364 = vcmp.gt.s32.totalorder %v214, 3
    %v365 = vsel %vm364, 1, 0
    %366 = vset.pattern.permute.xlu0 0
    %367 = vperm.xlu0 %366, %v365
    %v368 = vpop.permute.xlu0 %367
    %vm369 = vcmp.eq.s32.totalorder %v368, 1
    %v370 = vsel %vm369, %v363, 0.0
    %s371 = scalar_lea.vmem [#allocation3], 24
    %372 = vst [vmem:[%s371] sm:$0xff] %v370
    %v373 = vsel %vm369, %v363, %v345
    %s374 = scalar_lea.vmem [#allocation2], 32
    %v375 = vld [vmem:[%s374] sm:$0xff]
    %v376 = vpack.c.bf16 %v373, %v373
    %377 = vmatpush.bf16.msra.mxu0 %v257
    %378 = vmatpush.bf16.msra.mxu0 %v256
    %379 = vmatpush.bf16.msra.mxu0 %v255
    %380 = vmatpush.bf16.msra.mxu0 %v254
    %381 = vmatpush.bf16.msra.mxu0 %v253
    %382 = vmatpush.bf16.msra.mxu0 %v252
    %383 = vmatpush.bf16.msra.mxu0 %v251
    %384 = vmatpush.bf16.msra.mxu0 %v250
    %385 = vmatmul.bf16.gmra.mxu0 %v376
    %v386 = vpop.f32.mrf.mxu0
    %v387 = vadd.f32 0.0, %v386
    %v388 = vpop.f32.mrf.mxu0
    %389 = vdwg.mxu0
    %v390 = vadd.f32 %v375, %v387
    %v391 = vtanh.pop %v390
    %vm392 = vcmp.gt.s32.totalorder %v214, 4
    %v393 = vsel %vm392, 1, 0
    %394 = vset.pattern.permute.xlu0 0
    %395 = vperm.xlu0 %394, %v393
    %v396 = vpop.permute.xlu0 %395
    %vm397 = vcmp.eq.s32.totalorder %v396, 1
    %v398 = vsel %vm397, %v391, 0.0
    %s399 = scalar_lea.vmem [#allocation3], 32
    %400 = vst [vmem:[%s399] sm:$0xff] %v398
    %v401 = vsel %vm397, %v391, %v373
    %s402 = scalar_lea.vmem [#allocation2], 40
    %v403 = vld [vmem:[%s402] sm:$0xff]
    %v404 = vpack.c.bf16 %v401, %v401
    %405 = vmatpush.bf16.msra.mxu0 %v257
    %406 = vmatpush.bf16.msra.mxu0 %v256
    %407 = vmatpush.bf16.msra.mxu0 %v255
    %408 = vmatpush.bf16.msra.mxu0 %v254
    %409 = vmatpush.bf16.msra.mxu0 %v253
    %410 = vmatpush.bf16.msra.mxu0 %v252
    %411 = vmatpush.bf16.msra.mxu0 %v251
    %412 = vmatpush.bf16.msra.mxu0 %v250
    %413 = vmatmul.bf16.gmra.mxu0 %v404
    %v414 = vpop.f32.mrf.mxu0
    %v415 = vadd.f32 0.0, %v414
    %v416 = vpop.f32.mrf.mxu0
    %417 = vdwg.mxu0
    %v418 = vadd.f32 %v403, %v415
    %v419 = vtanh.pop %v418
    %vm420 = vcmp.gt.s32.totalorder %v214, 5
    %v421 = vsel %vm420, 1, 0
    %422 = vset.pattern.permute.xlu0 0
    %423 = vperm.xlu0 %422, %v421
    %v424 = vpop.permute.xlu0 %423
    %vm425 = vcmp.eq.s32.totalorder %v424, 1
    %v426 = vsel %vm425, %v419, 0.0
    %s427 = scalar_lea.vmem [#allocation3], 40
    %428 = vst [vmem:[%s427] sm:$0xff] %v426
    %v429 = vsel %vm425, %v419, %v401
    %s430 = scalar_lea.vmem [#allocation2], 48
    %v431 = vld [vmem:[%s430] sm:$0xff]
    %v432 = vpack.c.bf16 %v429, %v429
    %433 = vmatpush.bf16.msra.mxu0 %v257
    %434 = vmatpush.bf16.msra.mxu0 %v256
    %435 = vmatpush.bf16.msra.mxu0 %v255
    %436 = vmatpush.bf16.msra.mxu0 %v254
    %437 = vmatpush.bf16.msra.mxu0 %v253
    %438 = vmatpush.bf16.msra.mxu0 %v252
    %439 = vmatpush.bf16.msra.mxu0 %v251
    %440 = vmatpush.bf16.msra.mxu0 %v250
    %441 = vmatmul.bf16.gmra.mxu0 %v432
    %v442 = vpop.f32.mrf.mxu0
    %v443 = vadd.f32 0.0, %v442
    %v444 = vpop.f32.mrf.mxu0
    %445 = vdwg.mxu0
    %v446 = vadd.f32 %v431, %v443
    %v447 = vtanh.pop %v446
    %vm448 = vcmp.gt.s32.totalorder %v214, 6
    %v449 = vsel %vm448, 1, 0
    %450 = vset.pattern.permute.xlu0 0
    %451 = vperm.xlu0 %450, %v449
    %v452 = vpop.permute.xlu0 %451
    %vm453 = vcmp.eq.s32.totalorder %v452, 1
    %v454 = vsel %vm453, %v447, 0.0
    %s455 = scalar_lea.vmem [#allocation3], 48
    %456 = vst [vmem:[%s455] sm:$0xff] %v454
    %v457 = vsel %vm453, %v447, %v429
    %s458 = scalar_lea.vmem [#allocation2], 56
    %v459 = vld [vmem:[%s458] sm:$0xff]
    %v460 = vpack.c.bf16 %v457, %v457
    %461 = vmatpush.bf16.msra.mxu0 %v257
    %462 = vmatpush.bf16.msra.mxu0 %v256
    %463 = vmatpush.bf16.msra.mxu0 %v255
    %464 = vmatpush.bf16.msra.mxu0 %v254
    %465 = vmatpush.bf16.msra.mxu0 %v253
    %466 = vmatpush.bf16.msra.mxu0 %v252
    %467 = vmatpush.bf16.msra.mxu0 %v251
    %468 = vmatpush.bf16.msra.mxu0 %v250
    %469 = vmatmul.bf16.gmra.mxu0 %v460
    %v470 = vpop.f32.mrf.mxu0
    %v471 = vadd.f32 0.0, %v470
    %v472 = vpop.f32.mrf.mxu0
    %473 = vdwg.mxu0
    %v474 = vadd.f32 %v459, %v471
    %v475 = vtanh.pop %v474
    %vm476 = vcmp.gt.s32.totalorder %v214, 7
    %v477 = vsel %vm476, 1, 0
    %478 = vset.pattern.permute.xlu0 0
    %479 = vperm.xlu0 %478, %v477
    %v480 = vpop.permute.xlu0 %479
    %vm481 = vcmp.eq.s32.totalorder %v480, 1
    %v482 = vsel %vm481, %v475, 0.0
    %s483 = scalar_lea.vmem [#allocation3], 56
    %484 = vst [vmem:[%s483] sm:$0xff] %v482
    %v485 = vld [vmem:[#allocation3] sm:$0xff]
    %v486 = vld [vmem:[#allocation3 + $0x8] sm:$0xff]
    %v487 = vld [vmem:[#allocation3 + $0x10] sm:$0xff]
    %v488 = vld [vmem:[#allocation3 + $0x18] sm:$0xff]
    %v489 = vld [vmem:[#allocation3 + $0x20] sm:$0xff]
    %v490 = vld [vmem:[#allocation3 + $0x28] sm:$0xff]
    %v491 = vld [vmem:[#allocation3 + $0x30] sm:$0xff]
    %v492 = vld [vmem:[#allocation3 + $0x38] sm:$0xff]
    %v493 = vpack.c.bf16 %v486, %v485
    %v494 = vpack.c.bf16 %v488, %v487
    %v495 = vpack.c.bf16 %v490, %v489
    %v496 = vpack.c.bf16 %v492, %v491
    %v497 = vld [vmem:[#allocation6] sm:$0xf]
    %v498 = vld [vmem:[#allocation6 + $0x4] sm:$0xf]
    %v499 = vld [vmem:[#allocation6 + $0x8] sm:$0xf]
    %v500 = vld [vmem:[#allocation6 + $0xc] sm:$0xf]
    %v501 = vld [vmem:[#allocation6 + $0x10] sm:$0xf]
    %v502 = vld [vmem:[#allocation6 + $0x14] sm:$0xf]
    %v503 = vld [vmem:[#allocation6 + $0x18] sm:$0xf]
    %v504 = vld [vmem:[#allocation6 + $0x1c] sm:$0xf]
    %v505 = vld [vmem:[#allocation6 + $0x20] sm:$0xf]
    %v506 = vld [vmem:[#allocation6 + $0x24] sm:$0xf]
    %v507 = vld [vmem:[#allocation6 + $0x28] sm:$0xf]
    %v508 = vld [vmem:[#allocation6 + $0x2c] sm:$0xf]
    %v509 = vld [vmem:[#allocation6 + $0x30] sm:$0xf]
    %v510 = vld [vmem:[#allocation6 + $0x34] sm:$0xf]
    %v511 = vld [vmem:[#allocation6 + $0x38] sm:$0xf]
    %v512 = vld [vmem:[#allocation6 + $0x3c] sm:$0xf]
    %v513 = vld [vmem:[%s7] sm:$0x1]
    %v515 = vperm.slane %v513, 0
    %v533 = vunpack.c.l.b16 %v497
    %v534 = vunpack.c.l.b16 %v498
    %v535 = vunpack.c.l.b16 %v499
    %v536 = vunpack.c.l.b16 %v500
    %v537 = vunpack.c.l.b16 %v501
    %v538 = vunpack.c.l.b16 %v502
    %v539 = vunpack.c.l.b16 %v503
    %v540 = vunpack.c.l.b16 %v504
    %v541 = vunpack.c.l.b16 %v505
    %v542 = vunpack.c.l.b16 %v506
    %v543 = vunpack.c.l.b16 %v507
    %v544 = vunpack.c.l.b16 %v508
    %v545 = vunpack.c.l.b16 %v509
    %v546 = vunpack.c.l.b16 %v510
    %v547 = vunpack.c.l.b16 %v511
    %v548 = vunpack.c.l.b16 %v512
    %v549 = vpack.c.b16 %v534, %v533
    %v550 = vpack.c.b16 %v536, %v535
    %v551 = vpack.c.b16 %v538, %v537
    %v552 = vpack.c.b16 %v540, %v539
    %v553 = vpack.c.b16 %v542, %v541
    %v554 = vpack.c.b16 %v544, %v543
    %v555 = vpack.c.b16 %v546, %v545
    %v556 = vpack.c.b16 %v548, %v547
    %565 = vmatpush.bf16.msra.mxu0 %v556
    %566 = vmatpush.bf16.msra.mxu0 %v555
    %567 = vmatpush.bf16.msra.mxu0 %v554
    %568 = vmatpush.bf16.msra.mxu0 %v553
    %569 = vmatpush.bf16.msra.mxu0 %v552
    %570 = vmatpush.bf16.msra.mxu0 %v551
    %571 = vmatpush.bf16.msra.mxu0 %v550
    %572 = vmatpush.bf16.msra.mxu0 %v549
    %573 = vmatmul.bf16.gmra.mxu0 %v493
    %v574 = vpop.f32.mrf.mxu0
    %v575 = vadd.f32 %v515, %v574
    %v576 = vpop.f32.mrf.mxu0
    %v577 = vadd.f32 %v515, %v576
    %578 = vmatmul.bf16.gmra.mxu0 %v494
    %v579 = vpop.f32.mrf.mxu0
    %v580 = vadd.f32 %v515, %v579
    %v581 = vpop.f32.mrf.mxu0
    %v582 = vadd.f32 %v515, %v581
    %583 = vmatmul.bf16.gmra.mxu0 %v495
    %v584 = vpop.f32.mrf.mxu0
    %v585 = vadd.f32 %v515, %v584
    %v586 = vpop.f32.mrf.mxu0
    %v587 = vadd.f32 %v515, %v586
    %588 = vmatmul.bf16.gmra.mxu0 %v496
    %v589 = vpop.f32.mrf.mxu0
    %v590 = vadd.f32 %v515, %v589
    %v591 = vpop.f32.mrf.mxu0
    %v592 = vadd.f32 %v515, %v591
    %593 = vdwg.mxu0
    %594 = vmax.xlane.f32.xlu0 %v575
    %v595 = vpop.xlane.xlu0 %594
    %596 = vmax.xlane.f32.xlu0 %v577
    %v597 = vpop.xlane.xlu0 %596
    %598 = vmax.xlane.f32.xlu0 %v580
    %v599 = vpop.xlane.xlu0 %598
    %600 = vmax.xlane.f32.xlu0 %v582
    %v601 = vpop.xlane.xlu0 %600
    %602 = vmax.xlane.f32.xlu0 %v585
    %v603 = vpop.xlane.xlu0 %602
    %604 = vmax.xlane.f32.xlu0 %v587
    %v605 = vpop.xlane.xlu0 %604
    %606 = vmax.xlane.f32.xlu0 %v590
    %v607 = vpop.xlane.xlu0 %606
    %608 = vmax.xlane.f32.xlu0 %v592
    %v609 = vpop.xlane.xlu0 %608
    %v610 = vsub.f32 %v575, %v595
    %v611 = vsub.f32 %v577, %v597
    %v612 = vsub.f32 %v580, %v599
    %v613 = vsub.f32 %v582, %v601
    %v614 = vsub.f32 %v585, %v603
    %v615 = vsub.f32 %v587, %v605
    %v616 = vsub.f32 %v590, %v607
    %v617 = vsub.f32 %v592, %v609
    %v618 = vmul.f32 %v610, 1.442695
    %v619 = vpow.pop %v618
    %v620 = vmul.f32 %v611, 1.442695
    %v621 = vpow.pop %v620
    %v622 = vmul.f32 %v612, 1.442695
    %v623 = vpow.pop %v622
    %v624 = vmul.f32 %v613, 1.442695
    %v625 = vpow.pop %v624
    %v626 = vmul.f32 %v614, 1.442695
    %v627 = vpow.pop %v626
    %v628 = vmul.f32 %v615, 1.442695
    %v629 = vpow.pop %v628
    %v630 = vmul.f32 %v616, 1.442695
    %v631 = vpow.pop %v630
    %v632 = vmul.f32 %v617, 1.442695
    %v633 = vpow.pop %v632
    %634 = vadd.xlane.f32.xlu0 %v619
    %v635 = vpop.xlane.xlu0 %634
    %636 = vadd.xlane.f32.xlu0 %v621
    %v637 = vpop.xlane.xlu0 %636
    %638 = vadd.xlane.f32.xlu0 %v623
    %v639 = vpop.xlane.xlu0 %638
    %640 = vadd.xlane.f32.xlu0 %v625
    %v641 = vpop.xlane.xlu0 %640
    %642 = vadd.xlane.f32.xlu0 %v627
    %v643 = vpop.xlane.xlu0 %642
    %644 = vadd.xlane.f32.xlu0 %v629
    %v645 = vpop.xlane.xlu0 %644
    %646 = vadd.xlane.f32.xlu0 %v631
    %v647 = vpop.xlane.xlu0 %646
    %648 = vadd.xlane.f32.xlu0 %v633
    %v649 = vpop.xlane.xlu0 %648
    %v650 = vlog2.pop %v635
    %v651 = vmul.f32 %v650, 0.6931472
    %v652 = vlog2.pop %v637
    %v653 = vmul.f32 %v652, 0.6931472
    %v654 = vlog2.pop %v639
    %v655 = vmul.f32 %v654, 0.6931472
    %v656 = vlog2.pop %v641
    %v657 = vmul.f32 %v656, 0.6931472
    %v658 = vlog2.pop %v643
    %v659 = vmul.f32 %v658, 0.6931472
    %v660 = vlog2.pop %v645
    %v661 = vmul.f32 %v660, 0.6931472
    %v662 = vlog2.pop %v647
    %v663 = vmul.f32 %v662, 0.6931472
    %v664 = vlog2.pop %v649
    %v665 = vmul.f32 %v664, 0.6931472
    %v666 = vadd.f32 %v595, %v651
    %v667 = vadd.f32 %v597, %v653
    %v668 = vadd.f32 %v599, %v655
    %v669 = vadd.f32 %v601, %v657
    %v670 = vadd.f32 %v603, %v659
    %v671 = vadd.f32 %v605, %v661
    %v672 = vadd.f32 %v607, %v663
    %v673 = vadd.f32 %v609, %v665
    %v674 = vsub.f32 %v575, %v666
    %v675 = vsub.f32 %v577, %v667
    %v676 = vsub.f32 %v580, %v668
    %v677 = vsub.f32 %v582, %v669
    %v678 = vsub.f32 %v585, %v670
    %v679 = vsub.f32 %v587, %v671
    %v680 = vsub.f32 %v590, %v672
    %v681 = vsub.f32 %v592, %v673
    %682 = vst [vmem:[%s8] sm:$0xff] %v674
    %683 = vst [vmem:[%s8 + $0x8] sm:$0xff] %v675
    %684 = vst [vmem:[%s8 + $0x10] sm:$0xff] %v676
    %685 = vst [vmem:[%s8 + $0x18] sm:$0xff] %v677
    %686 = vst [vmem:[%s8 + $0x20] sm:$0xff] %v678
    %687 = vst [vmem:[%s8 + $0x28] sm:$0xff] %v679
    %688 = vst [vmem:[%s8 + $0x30] sm:$0xff] %v680
    %689 = vst [vmem:[%s8 + $0x38] sm:$0xff] %v681
    // Predicated region
    $region42: #{vae_forward.3} parent=1 // pred_check
      _
    $region43: #{vae_forward.3} parent=1 // pred_check_branch
      %691 = sbr.rel (0) target = $region45
    $region44: #{vae_forward.3} parent=1 // pred_region
      _
    $region45: #{vae_forward.3} parent=1 // pred_fallthru
      _
    // Predicated region
    $region46: #{vae_forward.3} parent=1 // pred_check
      _
    $region47: #{vae_forward.3} parent=1 // pred_check_branch
      %693 = sbr.rel (0) target = $region49
    $region48: #{vae_forward.3} parent=1 // pred_region
      _
    $region49: #{vae_forward.3} parent=1 // pred_fallthru
      _
    %694 = vsyncpa [#allocation5], 1
    %695 = vsyncpa [#allocation7], 1

// kernel: vae_forward.2
$region0: #{vae_forward.2}
  #allocation0 [shape = 'u32[]', space=smem, size = 0x4, offset = 0x4, fixed_abs, tag = 'smem constant byte address 0x4 - core index']
  #allocation1 [shape = 'u32[72,128]{1,0:T(1,128)}', space=vmem, size = 0x9000, scoped, tag = 'internal scratch']
  #allocation2 [shape = 'f32[64,128]{1,0:T(8,128)}', space=vmem, size = 0x8000, scoped, tag = 'scratch operand']
  %s0 = inlined_call_operand.vmem [shape: bf16[64,128], index: 0, kind: input, shape index: {}]
  %s1 = inlined_call_operand.vmem [shape: s32[8,1], index: 1, kind: input, shape index: {}]
  %s2 = inlined_call_operand.vmem [shape: bf16[128,128], index: 2, kind: input, shape index: {}]
  %s3 = inlined_call_operand.hbm [shape: bf16[128,128], index: 3, kind: input, shape index: {}]
  %s4 = inlined_call_operand.vmem [shape: f32[1,128], index: 4, kind: input, shape index: {}]
  %s5 = inlined_call_operand.vmem [shape: bf16[128,256], index: 5, kind: input, shape index: {}]
  %s6 = inlined_call_operand.vmem [shape: f32[1,256], index: 6, kind: input, shape index: {}]
  %s7 = inlined_call_operand.vmem [shape: f32[8,128], index: 7, kind: input, shape index: {}]
  %s8 = inlined_call_operand.hbm [shape: bf16[128,128], index: 8, kind: input, shape index: {}]
  %s9 = inlined_call_operand.vmem [shape: f32[1,128], index: 9, kind: input, shape index: {}]
  %s10 = inlined_call_operand.vmem [shape: f32[8,256], index: 10, kind: output, shape index: {0}]
  %s11 = inlined_call_operand.vmem [shape: f32[8,128], index: 11, kind: output, shape index: {1}]
  %12 = xla_tuple %s10, %s11
  %s13 = sld [smem:[#allocation0]]
  $region66: #{vae_forward.2} parent=0
    _
  %s15 = ssub.s32 1, %s13
  %s16 = scalar_select 0, %s15, %s13
  $region1: #{vae_forward.2} parent=0
    #allocation3 [shape = 'u8[32768]{0}', space=vmem, size = 0x8000, scoped, tag = 'input window, operand 3, single buffered']
    #allocation4 [shape = 's32[1]{0}', space=sflag, size = 0x4, scoped, tag = 'scoped memory for vae_forward.2']
    #allocation5 [shape = 'u8[32768]{0}', space=vmem, size = 0x8000, scoped, tag = 'input window, operand 8, single buffered']
    #allocation6 [shape = 's32[1]{0}', space=sflag, size = 0x4, scoped, tag = 'scoped memory for vae_forward.2']
    %17 = vsyncpa [#allocation4], 0
    %18 = vsyncpa [#allocation6], 0
    // Predicated region
    $region2: #{vae_forward.2} parent=1 // pred_check
      _
    $region3: #{vae_forward.2} parent=1 // pred_check_branch
      %20 = sbr.rel (0) target = $region5
    $region4: #{vae_forward.2} parent=1 // pred_region
      _
    $region5: #{vae_forward.2} parent=1 // pred_fallthru
      _
    // Predicated region
    $region6: #{vae_forward.2} parent=1 // pred_check
      _
    $region7: #{vae_forward.2} parent=1 // pred_check_branch
      %22 = sbr.rel (0) target = $region9
    $region8: #{vae_forward.2} parent=1 // pred_region
      _
    $region9: #{vae_forward.2} parent=1 // pred_fallthru
      _
    // Predicated region
    $region10: #{vae_forward.2} parent=1 // pred_check
      _
    $region11: #{vae_forward.2} parent=1 // pred_check_branch
      %24 = sbr.rel (0) target = $region13
    $region12: #{vae_forward.2} parent=1 // pred_region
      _
    $region13: #{vae_forward.2} parent=1 // pred_fallthru
      _
    // Predicated region
    $region14: #{vae_forward.2} parent=1 // pred_check
      _
    $region15: #{vae_forward.2} parent=1 // pred_check_branch
      %26 = sbr.rel (0) target = $region17
    $region16: #{vae_forward.2} parent=1 // pred_region
      %28 = vsyncadd [#allocation4], 0
      %s29 = sshll.u32 %s3, 4
      %s30 = int_to_ptr.hbm [resolvable:$true] %s29
      %s31 = sshll.u32 [#allocation3], 4
      %s32 = int_to_ptr.vmem [resolvable:$true] %s31
      %37 = dma.hbm_to_vmem [thread:$0]  %s30, 1024, %s32, [#allocation4], 64, 64, 4
    $region17: #{vae_forward.2} parent=1 // pred_fallthru
      _
    // Predicated region
    $region18: #{vae_forward.2} parent=1 // pred_check
      _
    $region19: #{vae_forward.2} parent=1 // pred_check_branch
      %39 = sbr.rel (0) target = $region21
    $region20: #{vae_forward.2} parent=1 // pred_region
      _
    $region21: #{vae_forward.2} parent=1 // pred_fallthru
      _
    // Predicated region
    $region22: #{vae_forward.2} parent=1 // pred_check
      _
    $region23: #{vae_forward.2} parent=1 // pred_check_branch
      %41 = sbr.rel (0) target = $region25
    $region24: #{vae_forward.2} parent=1 // pred_region
      _
    $region25: #{vae_forward.2} parent=1 // pred_fallthru
      _
    // Predicated region
    $region26: #{vae_forward.2} parent=1 // pred_check
      _
    $region27: #{vae_forward.2} parent=1 // pred_check_branch
      %43 = sbr.rel (0) target = $region29
    $region28: #{vae_forward.2} parent=1 // pred_region
      _
    $region29: #{vae_forward.2} parent=1 // pred_fallthru
      _
    // Predicated region
    $region30: #{vae_forward.2} parent=1 // pred_check
      _
    $region31: #{vae_forward.2} parent=1 // pred_check_branch
      %45 = sbr.rel (0) target = $region33
    $region32: #{vae_forward.2} parent=1 // pred_region
      _
    $region33: #{vae_forward.2} parent=1 // pred_fallthru
      _
    // Predicated region
    $region34: #{vae_forward.2} parent=1 // pred_check
      _
    $region35: #{vae_forward.2} parent=1 // pred_check_branch
      %47 = sbr.rel (0) target = $region37
    $region36: #{vae_forward.2} parent=1 // pred_region
      %49 = vsyncadd [#allocation6], 0
      %s50 = sshll.u32 %s8, 4
      %s51 = int_to_ptr.hbm [resolvable:$true] %s50
      %s52 = sshll.u32 [#allocation5], 4
      %s53 = int_to_ptr.vmem [resolvable:$true] %s52
      %58 = dma.hbm_to_vmem [thread:$0]  %s51, 1024, %s53, [#allocation6], 64, 64, 4
    $region37: #{vae_forward.2} parent=1 // pred_fallthru
      _
    // Predicated region
    $region38: #{vae_forward.2} parent=1 // pred_check
      _
    $region39: #{vae_forward.2} parent=1 // pred_check_branch
      %60 = sbr.rel (0) target = $region41
    $region40: #{vae_forward.2} parent=1 // pred_region
      _
    $region41: #{vae_forward.2} parent=1 // pred_fallthru
      _
    // Predicated region
    $region42: #{vae_forward.2} parent=1 // pred_check
      _
    $region43: #{vae_forward.2} parent=1 // pred_check_branch
      %62 = sbr.rel (0) target = $region45
    $region44: #{vae_forward.2} parent=1 // pred_region
      %64 = dma.done [#allocation4], 1024
    $region45: #{vae_forward.2} parent=1 // pred_fallthru
      _
    // Predicated region
    $region46: #{vae_forward.2} parent=1 // pred_check
      _
    $region47: #{vae_forward.2} parent=1 // pred_check_branch
      %66 = sbr.rel (0) target = $region49
    $region48: #{vae_forward.2} parent=1 // pred_region
      %68 = dma.done [#allocation6], 1024
    $region49: #{vae_forward.2} parent=1 // pred_fallthru
      _
    %v70 = vld [vmem:[%s0] sm:$0xf]
    %v71 = vld [vmem:[%s0 + $0x4] sm:$0xf]
    %v72 = vld [vmem:[%s0 + $0x8] sm:$0xf]
    %v73 = vld [vmem:[%s0 + $0xc] sm:$0xf]
    %v74 = vld [vmem:[%s0 + $0x10] sm:$0xf]
    %v75 = vld [vmem:[%s0 + $0x14] sm:$0xf]
    %v76 = vld [vmem:[%s0 + $0x18] sm:$0xf]
    %v77 = vld [vmem:[%s0 + $0x1c] sm:$0xf]
    %v78 = vld [vmem:[%s2] sm:$0xf]
    %v79 = vld [vmem:[%s2 + $0x4] sm:$0xf]
    %v80 = vld [vmem:[%s2 + $0x8] sm:$0xf]
    %v81 = vld [vmem:[%s2 + $0xc] sm:$0xf]
    %v82 = vld [vmem:[%s2 + $0x10] sm:$0xf]
    %v83 = vld [vmem:[%s2 + $0x14] sm:$0xf]
    %v84 = vld [vmem:[%s2 + $0x18] sm:$0xf]
    %v85 = vld [vmem:[%s2 + $0x1c] sm:$0xf]
    %v86 = vld [vmem:[%s2 + $0x20] sm:$0xf]
    %v87 = vld [vmem:[%s2 + $0x24] sm:$0xf]
    %v88 = vld [vmem:[%s2 + $0x28] sm:$0xf]
    %v89 = vld [vmem:[%s2 + $0x2c] sm:$0xf]
    %v90 = vld [vmem:[%s2 + $0x30] sm:$0xf]
    %v91 = vld [vmem:[%s2 + $0x34] sm:$0xf]
    %v92 = vld [vmem:[%s2 + $0x38] sm:$0xf]
    %v93 = vld [vmem:[%s2 + $0x3c] sm:$0xf]
    %v94 = vld [vmem:[%s4] sm:$0x1]
    %v96 = vperm.slane %v94, 0
    %v106 = vunpack.c.l.b16 %v70
    %v107 = vunpack.c.l.b16 %v71
    %v108 = vunpack.c.l.b16 %v72
    %v109 = vunpack.c.l.b16 %v73
    %v110 = vunpack.c.l.b16 %v74
    %v111 = vunpack.c.l.b16 %v75
    %v112 = vunpack.c.l.b16 %v76
    %v113 = vunpack.c.l.b16 %v77
    %v114 = vpack.c.b16 %v107, %v106
    %v115 = vpack.c.b16 %v109, %v108
    %v116 = vpack.c.b16 %v111, %v110
    %v117 = vpack.c.b16 %v113, %v112
    %v138 = vunpack.c.l.b16 %v78
    %v139 = vunpack.c.l.b16 %v79
    %v140 = vunpack.c.l.b16 %v80
    %v141 = vunpack.c.l.b16 %v81
    %v142 = vunpack.c.l.b16 %v82
    %v143 = vunpack.c.l.b16 %v83
    %v144 = vunpack.c.l.b16 %v84
    %v145 = vunpack.c.l.b16 %v85
    %v146 = vunpack.c.l.b16 %v86
    %v147 = vunpack.c.l.b16 %v87
    %v148 = vunpack.c.l.b16 %v88
    %v149 = vunpack.c.l.b16 %v89
    %v150 = vunpack.c.l.b16 %v90
    %v151 = vunpack.c.l.b16 %v91
    %v152 = vunpack.c.l.b16 %v92
    %v153 = vunpack.c.l.b16 %v93
    %v154 = vpack.c.b16 %v139, %v138
    %v155 = vpack.c.b16 %v141, %v140
    %v156 = vpack.c.b16 %v143, %v142
    %v157 = vpack.c.b16 %v145, %v144
    %v158 = vpack.c.b16 %v147, %v146
    %v159 = vpack.c.b16 %v149, %v148
    %v160 = vpack.c.b16 %v151, %v150
    %v161 = vpack.c.b16 %v153, %v152
    %170 = vmatpush.bf16.msra.mxu0 %v161
    %171 = vmatpush.bf16.msra.mxu0 %v160
    %172 = vmatpush.bf16.msra.mxu0 %v159
    %173 = vmatpush.bf16.msra.mxu0 %v158
    %174 = vmatpush.bf16.msra.mxu0 %v157
    %175 = vmatpush.bf16.msra.mxu0 %v156
    %176 = vmatpush.bf16.msra.mxu0 %v155
    %177 = vmatpush.bf16.msra.mxu0 %v154
    %178 = vmatmul.bf16.gmra.mxu0 %v114
    %v179 = vpop.f32.mrf.mxu0
    %v180 = vadd.f32 %v96, %v179
    %v181 = vpop.f32.mrf.mxu0
    %v182 = vadd.f32 %v96, %v181
    %183 = vmatmul.bf16.gmra.mxu0 %v115
    %v184 = vpop.f32.mrf.mxu0
    %v185 = vadd.f32 %v96, %v184
    %v186 = vpop.f32.mrf.mxu0
    %v187 = vadd.f32 %v96, %v186
    %188 = vmatmul.bf16.gmra.mxu0 %v116
    %v189 = vpop.f32.mrf.mxu0
    %v190 = vadd.f32 %v96, %v189
    %v191 = vpop.f32.mrf.mxu0
    %v192 = vadd.f32 %v96, %v191
    %193 = vmatmul.bf16.gmra.mxu0 %v117
    %v194 = vpop.f32.mrf.mxu0
    %v195 = vadd.f32 %v96, %v194
    %v196 = vpop.f32.mrf.mxu0
    %v197 = vadd.f32 %v96, %v196
    %198 = vdwg.mxu0
    %199 = vst [vmem:[#allocation2] sm:$0xff] %v180
    %200 = vst [vmem:[#allocation2 + $0x8] sm:$0xff] %v182
    %201 = vst [vmem:[#allocation2 + $0x10] sm:$0xff] %v185
    %202 = vst [vmem:[#allocation2 + $0x18] sm:$0xff] %v187
    %203 = vst [vmem:[#allocation2 + $0x20] sm:$0xff] %v190
    %204 = vst [vmem:[#allocation2 + $0x28] sm:$0xff] %v192
    %205 = vst [vmem:[#allocation2 + $0x30] sm:$0xff] %v195
    %206 = vst [vmem:[#allocation2 + $0x38] sm:$0xff] %v197
    %v207 = vld [vmem:[#allocation3] sm:$0xf]
    %v208 = vld [vmem:[#allocation3 + $0x4] sm:$0xf]
    %v209 = vld [vmem:[#allocation3 + $0x8] sm:$0xf]
    %v210 = vld [vmem:[#allocation3 + $0xc] sm:$0xf]
    %v211 = vld [vmem:[#allocation3 + $0x10] sm:$0xf]
    %v212 = vld [vmem:[#allocation3 + $0x14] sm:$0xf]
    %v213 = vld [vmem:[#allocation3 + $0x18] sm:$0xf]
    %v214 = vld [vmem:[#allocation3 + $0x1c] sm:$0xf]
    %v215 = vld [vmem:[#allocation3 + $0x20] sm:$0xf]
    %v216 = vld [vmem:[#allocation3 + $0x24] sm:$0xf]
    %v217 = vld [vmem:[#allocation3 + $0x28] sm:$0xf]
    %v218 = vld [vmem:[#allocation3 + $0x2c] sm:$0xf]
    %v219 = vld [vmem:[#allocation3 + $0x30] sm:$0xf]
    %v220 = vld [vmem:[#allocation3 + $0x34] sm:$0xf]
    %v221 = vld [vmem:[#allocation3 + $0x38] sm:$0xf]
    %v222 = vld [vmem:[#allocation3 + $0x3c] sm:$0xf]
    %v223 = vld [vmem:[%s1] sm:$0xff]
    %v224 = vld [vmem:[#allocation2] sm:$0xff]
    %v241 = vunpack.c.l.b16 %v207
    %v242 = vunpack.c.l.b16 %v208
    %v243 = vunpack.c.l.b16 %v209
    %v244 = vunpack.c.l.b16 %v210
    %v245 = vunpack.c.l.b16 %v211
    %v246 = vunpack.c.l.b16 %v212
    %v247 = vunpack.c.l.b16 %v213
    %v248 = vunpack.c.l.b16 %v214
    %v249 = vunpack.c.l.b16 %v215
    %v250 = vunpack.c.l.b16 %v216
    %v251 = vunpack.c.l.b16 %v217
    %v252 = vunpack.c.l.b16 %v218
    %v253 = vunpack.c.l.b16 %v219
    %v254 = vunpack.c.l.b16 %v220
    %v255 = vunpack.c.l.b16 %v221
    %v256 = vunpack.c.l.b16 %v222
    %v257 = vpack.c.b16 %v242, %v241
    %v258 = vpack.c.b16 %v244, %v243
    %v259 = vpack.c.b16 %v246, %v245
    %v260 = vpack.c.b16 %v248, %v247
    %v261 = vpack.c.b16 %v250, %v249
    %v262 = vpack.c.b16 %v252, %v251
    %v263 = vpack.c.b16 %v254, %v253
    %v264 = vpack.c.b16 %v256, %v255
    %273 = vmatpush.bf16.msra.mxu0 %v264
    %274 = vmatpush.bf16.msra.mxu0 %v263
    %275 = vmatpush.bf16.msra.mxu0 %v262
    %276 = vmatpush.bf16.msra.mxu0 %v261
    %277 = vmatpush.bf16.msra.mxu0 %v260
    %278 = vmatpush.bf16.msra.mxu0 %v259
    %279 = vmatpush.bf16.msra.mxu0 %v258
    %280 = vmatpush.bf16.msra.mxu0 %v257
    %281 = vmatmul.bf16.gmra.mxu0 0
    %v282 = vpop.f32.mrf.mxu0
    %v283 = vadd.f32 0.0, %v282
    %v284 = vpop.f32.mrf.mxu0
    %285 = vdwg.mxu0
    %v286 = vadd.f32 %v224, %v283
    %v287 = vtanh.pop %v286
    %vm288 = vcmp.gt.s32.totalorder %v223, 0
    %v289 = vsel %vm288, 1, 0
    %290 = vset.pattern.permute.xlu0 0
    %291 = vperm.xlu0 %290, %v289
    %v292 = vpop.permute.xlu0 %291
    %vm293 = vcmp.eq.s32.totalorder %v292, 1
    %v294 = vsel %vm293, %v287, 0.0
    %s295 = scalar_lea.vmem [#allocation2], 8
    %v296 = vld [vmem:[%s295] sm:$0xff]
    %v297 = vpack.c.bf16 %v294, %v294
    %298 = vmatpush.bf16.msra.mxu0 %v264
    %299 = vmatpush.bf16.msra.mxu0 %v263
    %300 = vmatpush.bf16.msra.mxu0 %v262
    %301 = vmatpush.bf16.msra.mxu0 %v261
    %302 = vmatpush.bf16.msra.mxu0 %v260
    %303 = vmatpush.bf16.msra.mxu0 %v259
    %304 = vmatpush.bf16.msra.mxu0 %v258
    %305 = vmatpush.bf16.msra.mxu0 %v257
    %306 = vmatmul.bf16.gmra.mxu0 %v297
    %v307 = vpop.f32.mrf.mxu0
    %v308 = vadd.f32 0.0, %v307
    %v309 = vpop.f32.mrf.mxu0
    %310 = vdwg.mxu0
    %v311 = vadd.f32 %v296, %v308
    %v312 = vtanh.pop %v311
    %vm313 = vcmp.gt.s32.totalorder %v223, 1
    %v314 = vsel %vm313, 1, 0
    %315 = vset.pattern.permute.xlu0 0
    %316 = vperm.xlu0 %315, %v314
    %v317 = vpop.permute.xlu0 %316
    %vm318 = vcmp.eq.s32.totalorder %v317, 1
    %v319 = vsel %vm318, %v312, %v294
    %s320 = scalar_lea.vmem [#allocation2], 16
    %v321 = vld [vmem:[%s320] sm:$0xff]
    %v322 = vpack.c.bf16 %v319, %v319
    %323 = vmatpush.bf16.msra.mxu0 %v264
    %324 = vmatpush.bf16.msra.mxu0 %v263
    %325 = vmatpush.bf16.msra.mxu0 %v262
    %326 = vmatpush.bf16.msra.mxu0 %v261
    %327 = vmatpush.bf16.msra.mxu0 %v260
    %328 = vmatpush.bf16.msra.mxu0 %v259
    %329 = vmatpush.bf16.msra.mxu0 %v258
    %330 = vmatpush.bf16.msra.mxu0 %v257
    %331 = vmatmul.bf16.gmra.mxu0 %v322
    %v332 = vpop.f32.mrf.mxu0
    %v333 = vadd.f32 0.0, %v332
    %v334 = vpop.f32.mrf.mxu0
    %335 = vdwg.mxu0
    %v336 = vadd.f32 %v321, %v333
    %v337 = vtanh.pop %v336
    %vm338 = vcmp.gt.s32.totalorder %v223, 2
    %v339 = vsel %vm338, 1, 0
    %340 = vset.pattern.permute.xlu0 0
    %341 = vperm.xlu0 %340, %v339
    %v342 = vpop.permute.xlu0 %341
    %vm343 = vcmp.eq.s32.totalorder %v342, 1
    %v344 = vsel %vm343, %v337, %v319
    %s345 = scalar_lea.vmem [#allocation2], 24
    %v346 = vld [vmem:[%s345] sm:$0xff]
    %v347 = vpack.c.bf16 %v344, %v344
    %348 = vmatpush.bf16.msra.mxu0 %v264
    %349 = vmatpush.bf16.msra.mxu0 %v263
    %350 = vmatpush.bf16.msra.mxu0 %v262
    %351 = vmatpush.bf16.msra.mxu0 %v261
    %352 = vmatpush.bf16.msra.mxu0 %v260
    %353 = vmatpush.bf16.msra.mxu0 %v259
    %354 = vmatpush.bf16.msra.mxu0 %v258
    %355 = vmatpush.bf16.msra.mxu0 %v257
    %356 = vmatmul.bf16.gmra.mxu0 %v347
    %v357 = vpop.f32.mrf.mxu0
    %v358 = vadd.f32 0.0, %v357
    %v359 = vpop.f32.mrf.mxu0
    %360 = vdwg.mxu0
    %v361 = vadd.f32 %v346, %v358
    %v362 = vtanh.pop %v361
    %vm363 = vcmp.gt.s32.totalorder %v223, 3
    %v364 = vsel %vm363, 1, 0
    %365 = vset.pattern.permute.xlu0 0
    %366 = vperm.xlu0 %365, %v364
    %v367 = vpop.permute.xlu0 %366
    %vm368 = vcmp.eq.s32.totalorder %v367, 1
    %v369 = vsel %vm368, %v362, %v344
    %s370 = scalar_lea.vmem [#allocation2], 32
    %v371 = vld [vmem:[%s370] sm:$0xff]
    %v372 = vpack.c.bf16 %v369, %v369
    %373 = vmatpush.bf16.msra.mxu0 %v264
    %374 = vmatpush.bf16.msra.mxu0 %v263
    %375 = vmatpush.bf16.msra.mxu0 %v262
    %376 = vmatpush.bf16.msra.mxu0 %v261
    %377 = vmatpush.bf16.msra.mxu0 %v260
    %378 = vmatpush.bf16.msra.mxu0 %v259
    %379 = vmatpush.bf16.msra.mxu0 %v258
    %380 = vmatpush.bf16.msra.mxu0 %v257
    %381 = vmatmul.bf16.gmra.mxu0 %v372
    %v382 = vpop.f32.mrf.mxu0
    %v383 = vadd.f32 0.0, %v382
    %v384 = vpop.f32.mrf.mxu0
    %385 = vdwg.mxu0
    %v386 = vadd.f32 %v371, %v383
    %v387 = vtanh.pop %v386
    %vm388 = vcmp.gt.s32.totalorder %v223, 4
    %v389 = vsel %vm388, 1, 0
    %390 = vset.pattern.permute.xlu0 0
    %391 = vperm.xlu0 %390, %v389
    %v392 = vpop.permute.xlu0 %391
    %vm393 = vcmp.eq.s32.totalorder %v392, 1
    %v394 = vsel %vm393, %v387, %v369
    %s395 = scalar_lea.vmem [#allocation2], 40
    %v396 = vld [vmem:[%s395] sm:$0xff]
    %v397 = vpack.c.bf16 %v394, %v394
    %398 = vmatpush.bf16.msra.mxu0 %v264
    %399 = vmatpush.bf16.msra.mxu0 %v263
    %400 = vmatpush.bf16.msra.mxu0 %v262
    %401 = vmatpush.bf16.msra.mxu0 %v261
    %402 = vmatpush.bf16.msra.mxu0 %v260
    %403 = vmatpush.bf16.msra.mxu0 %v259
    %404 = vmatpush.bf16.msra.mxu0 %v258
    %405 = vmatpush.bf16.msra.mxu0 %v257
    %406 = vmatmul.bf16.gmra.mxu0 %v397
    %v407 = vpop.f32.mrf.mxu0
    %v408 = vadd.f32 0.0, %v407
    %v409 = vpop.f32.mrf.mxu0
    %410 = vdwg.mxu0
    %v411 = vadd.f32 %v396, %v408
    %v412 = vtanh.pop %v411
    %vm413 = vcmp.gt.s32.totalorder %v223, 5
    %v414 = vsel %vm413, 1, 0
    %415 = vset.pattern.permute.xlu0 0
    %416 = vperm.xlu0 %415, %v414
    %v417 = vpop.permute.xlu0 %416
    %vm418 = vcmp.eq.s32.totalorder %v417, 1
    %v419 = vsel %vm418, %v412, %v394
    %s420 = scalar_lea.vmem [#allocation2], 48
    %v421 = vld [vmem:[%s420] sm:$0xff]
    %v422 = vpack.c.bf16 %v419, %v419
    %423 = vmatpush.bf16.msra.mxu0 %v264
    %424 = vmatpush.bf16.msra.mxu0 %v263
    %425 = vmatpush.bf16.msra.mxu0 %v262
    %426 = vmatpush.bf16.msra.mxu0 %v261
    %427 = vmatpush.bf16.msra.mxu0 %v260
    %428 = vmatpush.bf16.msra.mxu0 %v259
    %429 = vmatpush.bf16.msra.mxu0 %v258
    %430 = vmatpush.bf16.msra.mxu0 %v257
    %431 = vmatmul.bf16.gmra.mxu0 %v422
    %v432 = vpop.f32.mrf.mxu0
    %v433 = vadd.f32 0.0, %v432
    %v434 = vpop.f32.mrf.mxu0
    %435 = vdwg.mxu0
    %v436 = vadd.f32 %v421, %v433
    %v437 = vtanh.pop %v436
    %vm438 = vcmp.gt.s32.totalorder %v223, 6
    %v439 = vsel %vm438, 1, 0
    %440 = vset.pattern.permute.xlu0 0
    %441 = vperm.xlu0 %440, %v439
    %v442 = vpop.permute.xlu0 %441
    %vm443 = vcmp.eq.s32.totalorder %v442, 1
    %v444 = vsel %vm443, %v437, %v419
    %s445 = scalar_lea.vmem [#allocation2], 56
    %v446 = vld [vmem:[%s445] sm:$0xff]
    %v447 = vpack.c.bf16 %v444, %v444
    %448 = vmatpush.bf16.msra.mxu0 %v264
    %449 = vmatpush.bf16.msra.mxu0 %v263
    %450 = vmatpush.bf16.msra.mxu0 %v262
    %451 = vmatpush.bf16.msra.mxu0 %v261
    %452 = vmatpush.bf16.msra.mxu0 %v260
    %453 = vmatpush.bf16.msra.mxu0 %v259
    %454 = vmatpush.bf16.msra.mxu0 %v258
    %455 = vmatpush.bf16.msra.mxu0 %v257
    %456 = vmatmul.bf16.gmra.mxu0 %v447
    %v457 = vpop.f32.mrf.mxu0
    %v458 = vadd.f32 0.0, %v457
    %v459 = vpop.f32.mrf.mxu0
    %460 = vdwg.mxu0
    %v461 = vadd.f32 %v446, %v458
    %v462 = vtanh.pop %v461
    %vm463 = vcmp.gt.s32.totalorder %v223, 7
    %v464 = vsel %vm463, 1, 0
    %465 = vset.pattern.permute.xlu0 0
    %466 = vperm.xlu0 %465, %v464
    %v467 = vpop.permute.xlu0 %466
    %vm468 = vcmp.eq.s32.totalorder %v467, 1
    %v469 = vsel %vm468, %v462, %v444
    %v470 = vpack.c.bf16 %v469, %v469
    %v471 = vld [vmem:[%s5] sm:$0xff]
    %v472 = vld [vmem:[%s5 + $0x8] sm:$0xff]
    %v473 = vld [vmem:[%s5 + $0x10] sm:$0xff]
    %v474 = vld [vmem:[%s5 + $0x18] sm:$0xff]
    %v475 = vld [vmem:[%s5 + $0x20] sm:$0xff]
    %v476 = vld [vmem:[%s5 + $0x28] sm:$0xff]
    %v477 = vld [vmem:[%s5 + $0x30] sm:$0xff]
    %v478 = vld [vmem:[%s5 + $0x38] sm:$0xff]
    %v479 = vld [vmem:[%s5 + $0x40] sm:$0xff]
    %v480 = vld [vmem:[%s5 + $0x48] sm:$0xff]
    %v481 = vld [vmem:[%s5 + $0x50] sm:$0xff]
    %v482 = vld [vmem:[%s5 + $0x58] sm:$0xff]
    %v483 = vld [vmem:[%s5 + $0x60] sm:$0xff]
    %v484 = vld [vmem:[%s5 + $0x68] sm:$0xff]
    %v485 = vld [vmem:[%s5 + $0x70] sm:$0xff]
    %v486 = vld [vmem:[%s5 + $0x78] sm:$0xff]
    %v487 = vld [vmem:[%s6] sm:$0x3]
    %v489 = vperm.slane %v487, 0
    %v490 = vperm.slane %v487, 1
    %v509 = vunpack.c.l.b16 %v471
    %v510 = vunpack.c.h.b16 %v471
    %v511 = vunpack.c.l.b16 %v472
    %v512 = vunpack.c.h.b16 %v472
    %v513 = vunpack.c.l.b16 %v473
    %v514 = vunpack.c.h.b16 %v473
    %v515 = vunpack.c.l.b16 %v474
    %v516 = vunpack.c.h.b16 %v474
    %v517 = vunpack.c.l.b16 %v475
    %v518 = vunpack.c.h.b16 %v475
    %v519 = vunpack.c.l.b16 %v476
    %v520 = vunpack.c.h.b16 %v476
    %v521 = vunpack.c.l.b16 %v477
    %v522 = vunpack.c.h.b16 %v477
    %v523 = vunpack.c.l.b16 %v478
    %v524 = vunpack.c.h.b16 %v478
    %v525 = vunpack.c.l.b16 %v479
    %v526 = vunpack.c.h.b16 %v479
    %v527 = vunpack.c.l.b16 %v480
    %v528 = vunpack.c.h.b16 %v480
    %v529 = vunpack.c.l.b16 %v481
    %v530 = vunpack.c.h.b16 %v481
    %v531 = vunpack.c.l.b16 %v482
    %v532 = vunpack.c.h.b16 %v482
    %v533 = vunpack.c.l.b16 %v483
    %v534 = vunpack.c.h.b16 %v483
    %v535 = vunpack.c.l.b16 %v484
    %v536 = vunpack.c.h.b16 %v484
    %v537 = vunpack.c.l.b16 %v485
    %v538 = vunpack.c.h.b16 %v485
    %v539 = vunpack.c.l.b16 %v486
    %v540 = vunpack.c.h.b16 %v486
    %v541 = vpack.c.b16 %v511, %v509
    %v542 = vpack.c.b16 %v512, %v510
    %v543 = vpack.c.b16 %v515, %v513
    %v544 = vpack.c.b16 %v516, %v514
    %v545 = vpack.c.b16 %v519, %v517
    %v546 = vpack.c.b16 %v520, %v518
    %v547 = vpack.c.b16 %v523, %v521
    %v548 = vpack.c.b16 %v524, %v522
    %v549 = vpack.c.b16 %v527, %v525
    %v550 = vpack.c.b16 %v528, %v526
    %v551 = vpack.c.b16 %v531, %v529
    %v552 = vpack.c.b16 %v532, %v530
    %v553 = vpack.c.b16 %v535, %v533
    %v554 = vpack.c.b16 %v536, %v534
    %v555 = vpack.c.b16 %v539, %v537
    %v556 = vpack.c.b16 %v540, %v538
    %573 = vmatpush.bf16.msra.mxu0 %v555
    %574 = vmatpush.bf16.msra.mxu0 %v553
    %575 = vmatpush.bf16.msra.mxu0 %v551
    %576 = vmatpush.bf16.msra.mxu0 %v549
    %577 = vmatpush.bf16.msra.mxu0 %v547
    %578 = vmatpush.bf16.msra.mxu0 %v545
    %579 = vmatpush.bf16.msra.mxu0 %v543
    %580 = vmatpush.bf16.msra.mxu0 %v541
    %581 = vmatmul.bf16.gmra.mxu0 %v470
    %v582 = vpop.f32.mrf.mxu0
    %v583 = vadd.f32 %v489, %v582
    %v584 = vpop.f32.mrf.mxu0
    %585 = vdwg.mxu0
    %586 = vmatpush.bf16.msra.mxu0 %v556
    %587 = vmatpush.bf16.msra.mxu0 %v554
    %588 = vmatpush.bf16.msra.mxu0 %v552
    %589 = vmatpush.bf16.msra.mxu0 %v550
    %590 = vmatpush.bf16.msra.mxu0 %v548
    %591 = vmatpush.bf16.msra.mxu0 %v546
    %592 = vmatpush.bf16.msra.mxu0 %v544
    %593 = vmatpush.bf16.msra.mxu0 %v542
    %594 = vmatmul.bf16.gmra.mxu0 %v470
    %v595 = vpop.f32.mrf.mxu0
    %v596 = vadd.f32 %v490, %v595
    %v597 = vpop.f32.mrf.mxu0
    %598 = vdwg.mxu0
    %599 = vst [vmem:[%s10] sm:$0xff] %v583
    %600 = vst [vmem:[%s10 + $0x8] sm:$0xff] %v596
    %v601 = vmul.f32 %v596, 0.5
    %v602 = vmul.f32 %v601, 1.442695
    %v603 = vpow.pop %v602
    %v604 = vld [vmem:[%s7] sm:$0xff]
    %v605 = vmul.f32 %v603, %v604
    %v606 = vadd.f32 %v583, %v605
    %v607 = vpack.c.bf16 %v606, %v606
    %v608 = vld [vmem:[#allocation5] sm:$0xf]
    %v609 = vld [vmem:[#allocation5 + $0x4] sm:$0xf]
    %v610 = vld [vmem:[#allocation5 + $0x8] sm:$0xf]
    %v611 = vld [vmem:[#allocation5 + $0xc] sm:$0xf]
    %v612 = vld [vmem:[#allocation5 + $0x10] sm:$0xf]
    %v613 = vld [vmem:[#allocation5 + $0x14] sm:$0xf]
    %v614 = vld [vmem:[#allocation5 + $0x18] sm:$0xf]
    %v615 = vld [vmem:[#allocation5 + $0x1c] sm:$0xf]
    %v616 = vld [vmem:[#allocation5 + $0x20] sm:$0xf]
    %v617 = vld [vmem:[#allocation5 + $0x24] sm:$0xf]
    %v618 = vld [vmem:[#allocation5 + $0x28] sm:$0xf]
    %v619 = vld [vmem:[#allocation5 + $0x2c] sm:$0xf]
    %v620 = vld [vmem:[#allocation5 + $0x30] sm:$0xf]
    %v621 = vld [vmem:[#allocation5 + $0x34] sm:$0xf]
    %v622 = vld [vmem:[#allocation5 + $0x38] sm:$0xf]
    %v623 = vld [vmem:[#allocation5 + $0x3c] sm:$0xf]
    %v624 = vld [vmem:[%s9] sm:$0x1]
    %v626 = vperm.slane %v624, 0
    %v644 = vunpack.c.l.b16 %v608
    %v645 = vunpack.c.l.b16 %v609
    %v646 = vunpack.c.l.b16 %v610
    %v647 = vunpack.c.l.b16 %v611
    %v648 = vunpack.c.l.b16 %v612
    %v649 = vunpack.c.l.b16 %v613
    %v650 = vunpack.c.l.b16 %v614
    %v651 = vunpack.c.l.b16 %v615
    %v652 = vunpack.c.l.b16 %v616
    %v653 = vunpack.c.l.b16 %v617
    %v654 = vunpack.c.l.b16 %v618
    %v655 = vunpack.c.l.b16 %v619
    %v656 = vunpack.c.l.b16 %v620
    %v657 = vunpack.c.l.b16 %v621
    %v658 = vunpack.c.l.b16 %v622
    %v659 = vunpack.c.l.b16 %v623
    %v660 = vpack.c.b16 %v645, %v644
    %v661 = vpack.c.b16 %v647, %v646
    %v662 = vpack.c.b16 %v649, %v648
    %v663 = vpack.c.b16 %v651, %v650
    %v664 = vpack.c.b16 %v653, %v652
    %v665 = vpack.c.b16 %v655, %v654
    %v666 = vpack.c.b16 %v657, %v656
    %v667 = vpack.c.b16 %v659, %v658
    %676 = vmatpush.bf16.msra.mxu0 %v667
    %677 = vmatpush.bf16.msra.mxu0 %v666
    %678 = vmatpush.bf16.msra.mxu0 %v665
    %679 = vmatpush.bf16.msra.mxu0 %v664
    %680 = vmatpush.bf16.msra.mxu0 %v663
    %681 = vmatpush.bf16.msra.mxu0 %v662
    %682 = vmatpush.bf16.msra.mxu0 %v661
    %683 = vmatpush.bf16.msra.mxu0 %v660
    %684 = vmatmul.bf16.gmra.mxu0 %v607
    %v685 = vpop.f32.mrf.mxu0
    %v686 = vadd.f32 %v626, %v685
    %v687 = vpop.f32.mrf.mxu0
    %688 = vdwg.mxu0
    %689 = vst [vmem:[%s11] sm:$0xff] %v686
    // Predicated region
    $region50: #{vae_forward.2} parent=1 // pred_check
      _
    $region51: #{vae_forward.2} parent=1 // pred_check_branch
      %691 = sbr.rel (0) target = $region53
    $region52: #{vae_forward.2} parent=1 // pred_region
      _
    $region53: #{vae_forward.2} parent=1 // pred_fallthru
      _
    // Predicated region
    $region54: #{vae_forward.2} parent=1 // pred_check
      _
    $region55: #{vae_forward.2} parent=1 // pred_check_branch
      %693 = sbr.rel (0) target = $region57
    $region56: #{vae_forward.2} parent=1 // pred_region
      _
    $region57: #{vae_forward.2} parent=1 // pred_fallthru
      _
    // Predicated region
    $region58: #{vae_forward.2} parent=1 // pred_check
      _
    $region59: #{vae_forward.2} parent=1 // pred_check_branch
      %695 = sbr.rel (0) target = $region61
    $region60: #{vae_forward.2} parent=1 // pred_region
      _
    $region61: #{vae_forward.2} parent=1 // pred_fallthru
      _
    // Predicated region
    $region62: #{vae_forward.2} parent=1 // pred_check
      _
    $region63: #{vae_forward.2} parent=1 // pred_check_branch
      %697 = sbr.rel (0) target = $region65
    $region64: #{vae_forward.2} parent=1 // pred_region
      _
    $region65: #{vae_forward.2} parent=1 // pred_fallthru
      _
    %698 = vsyncpa [#allocation4], 1
    %699 = vsyncpa [#allocation6], 1

</llo_original>
